<compile_context>
chip_gen: v5e
topology: v5e:2x2
jax: 0.10.0
libtpu: 0.0.40
codegen_flags: <defaults>
</compile_context>

<pallas_src>
import functools

import jax
import jax.numpy as jnp
from jax import lax
from jax.experimental import pallas as pl
from jax.experimental.pallas import tpu as pltpu

BN_EPS = 1e-5


# --------------------------------------------------------------------------- #
# Kernel bodies
# --------------------------------------------------------------------------- #
def _lane_mask(tile, hw):
    """(1, tile) mask of lanes that map to real spatial positions (last tile
    of a row may be partial)."""
    t = pl.program_id(1)
    lane = lax.broadcasted_iota(jnp.int32, (1, tile), 1)
    return lane < jnp.minimum(tile, hw - t * tile)


def _accumulate_stats(y, mask, sum_ref, ssq_ref):
    """Accumulate masked per-channel sum and sum-of-squares across the grid."""
    @pl.when((pl.program_id(0) == 0) & (pl.program_id(1) == 0))
    def _():
        sum_ref[...] = jnp.zeros_like(sum_ref)
        ssq_ref[...] = jnp.zeros_like(ssq_ref)

    ym = jnp.where(mask, y, 0.0)
    sum_ref[...] += jnp.sum(ym, axis=1, keepdims=True)
    ssq_ref[...] += jnp.sum(ym * ym, axis=1, keepdims=True)


def _stats_kernel(w_ref, x_ref, sum_ref, ssq_ref, *, hw, tile):
    """Pass 1: per-channel stats of y = W @ x for layer 1 (no bias: BN cancels it)."""
    y = jnp.dot(w_ref[...], x_ref[0], preferred_element_type=jnp.float32)
    _accumulate_stats(y, _lane_mask(tile, hw), sum_ref, ssq_ref)


def _apply_stats_kernel(w_ref, scale_ref, shift_ref, wn_ref, x_ref,
                        h_ref, sum_ref, ssq_ref, *, hw, tile):
    """Apply layer k (conv + BN-affine + ReLU), write h_k, and accumulate the
    per-channel stats of the layer-(k+1) conv output in the same pass."""
    y = jnp.dot(w_ref[...], x_ref[0], preferred_element_type=jnp.float32)
    h = jnp.maximum(y * scale_ref[...] + shift_ref[...], 0.0)
    h_ref[0] = h
    yn = jnp.dot(wn_ref[...], h, preferred_element_type=jnp.float32)
    _accumulate_stats(yn, _lane_mask(tile, hw), sum_ref, ssq_ref)


def _apply_kernel(w_ref, scale_ref, shift_ref, x_ref, o_ref):
    """Final pass: apply last layer (conv + BN-affine + ReLU)."""
    y = jnp.dot(w_ref[...], x_ref[0], preferred_element_type=jnp.float32)
    o_ref[0] = jnp.maximum(y * scale_ref[...] + shift_ref[...], 0.0)


# --------------------------------------------------------------------------- #
# Wrapper
# --------------------------------------------------------------------------- #
def _bn_scale_shift(s, ssq, gamma, beta, n):
    """Fold batch stats + affine into per-channel (scale, shift), shape (C, 1)."""
    mean = s / n
    var = jnp.maximum(ssq / n - mean * mean, 0.0)   # biased var; guard fp negatives
    scale = gamma * lax.rsqrt(var + BN_EPS)
    shift = beta - mean * scale
    return scale, shift


def weightnet_forward(localized_xyz, params, tile_hw=512):
    """localized_xyz: (B, C_in, H, W) f32 -> (B, C_out, H, W) f32."""
    B, C_in, H, W = localized_xyz.shape
    HW = H * W
    x = localized_xyz.reshape(B, C_in, HW)           # no transpose needed

    (w1, _b1, g1, t1), (w2, _b2, g2, t2), (w3, _b3, g3, t3) = params
    c0, c1, c2, c3 = C_in, w1.shape[0], w2.shape[0], w3.shape[0]

    # Spatial tile: multiple of 128 (lane-dense) unless HW itself is smaller.
    tile = HW if HW <= tile_hw else tile_hw
    num_t = (HW + tile - 1) // tile
    grid = (B, num_t)
    n = float(B * HW)

    def data_spec(c):
        return pl.BlockSpec((1, c, tile), lambda b, t: (b, 0, t))

    def param_spec(shape):
        return pl.BlockSpec(shape, lambda b, t: tuple(0 for _ in shape))

    def acc_spec(c):
        return pl.BlockSpec((c, 1), lambda b, t: (0, 0))

    def stat_shape(c):
        return jax.ShapeDtypeStruct((c, 1), jnp.float32)

    # Stats accumulators are carried across the whole grid -> sequential axes.
    seq = pltpu.CompilerParams(dimension_semantics=("arbitrary", "arbitrary"))
    # Final pass has no carried state -> megacore-parallel (uses both TCs on v7x).
    par = pltpu.CompilerParams(dimension_semantics=("parallel", "parallel"))

    # Pass 1: layer-1 conv stats.
    s1, q1 = pl.pallas_call(
        functools.partial(_stats_kernel, hw=HW, tile=tile),
        grid=grid,
        in_specs=[param_spec(w1.shape), data_spec(c0)],
        out_specs=(acc_spec(c1), acc_spec(c1)),
        out_shape=(stat_shape(c1), stat_shape(c1)),
        compiler_params=seq,
    )(w1, x)
    sc1, sh1 = _bn_scale_shift(s1, q1, g1, t1, n)

    # Pass 2: apply layer 1, accumulate layer-2 stats, write h1.
    h1, s2, q2 = pl.pallas_call(
        functools.partial(_apply_stats_kernel, hw=HW, tile=tile),
        grid=grid,
        in_specs=[param_spec(w1.shape), param_spec(sc1.shape), param_spec(sh1.shape),
                  param_spec(w2.shape), data_spec(c0)],
        out_specs=(data_spec(c1), acc_spec(c2), acc_spec(c2)),
        out_shape=(jax.ShapeDtypeStruct((B, c1, HW), jnp.float32),
                   stat_shape(c2), stat_shape(c2)),
        compiler_params=seq,
    )(w1, sc1, sh1, w2, x)
    sc2, sh2 = _bn_scale_shift(s2, q2, g2, t2, n)

    # Pass 3: apply layer 2, accumulate layer-3 stats, write h2.
    h2, s3, q3 = pl.pallas_call(
        functools.partial(_apply_stats_kernel, hw=HW, tile=tile),
        grid=grid,
        in_specs=[param_spec(w2.shape), param_spec(sc2.shape), param_spec(sh2.shape),
                  param_spec(w3.shape), data_spec(c1)],
        out_specs=(data_spec(c2), acc_spec(c3), acc_spec(c3)),
        out_shape=(jax.ShapeDtypeStruct((B, c2, HW), jnp.float32),
                   stat_shape(c3), stat_shape(c3)),
        compiler_params=seq,
    )(w2, sc2, sh2, w3, h1)
    sc3, sh3 = _bn_scale_shift(s3, q3, g3, t3, n)

    # Pass 4: apply layer 3 -> output.
    out = pl.pallas_call(
        _apply_kernel,
        grid=grid,
        in_specs=[param_spec(w3.shape), param_spec(sc3.shape), param_spec(sh3.shape),
                  data_spec(c2)],
        out_specs=data_spec(c3),
        out_shape=jax.ShapeDtypeStruct((B, c3, HW), jnp.float32),
        compiler_params=par,
    )(w3, sc3, sh3, h2)

    return out.reshape(B, c3, H, W)


# --------------------------------------------------------------------------- #
# Parameters + pure-JAX reference (PyTorch-faithful, bias included)
# --------------------------------------------------------------------------- #
def init_weightnet_params(key, in_channel, out_channel, hidden_unit=(8, 8)):
    dims = [in_channel, *hidden_unit, out_channel]
    params = []
    for i in range(len(dims) - 1):
        cin, cout = dims[i], dims[i + 1]
        key, kw, kb = jax.random.split(key, 3)
        w = jax.random.normal(kw, (cout, cin), jnp.float32) * (1.0 / jnp.sqrt(cin))
        b = jax.random.normal(kb, (cout, 1), jnp.float32) * 0.1   # cancelled by BN
        gamma = jnp.ones((cout, 1), jnp.float32)                  # BN default weight
        beta = jnp.zeros((cout, 1), jnp.float32)                  # BN default bias
        params.append((w, b, gamma, beta))
    return params


def weightnet_reference(x, params):
    h = x
    for w, b, g, t in params:
        y = jnp.einsum("oc,bchw->bohw", w, h,
                       precision=lax.Precision.HIGHEST) + b.reshape(1, -1, 1, 1)
        mean = jnp.mean(y, axis=(0, 2, 3), keepdims=True)
        var = jnp.mean((y - mean) ** 2, axis=(0, 2, 3), keepdims=True)
        y = (y - mean) / jnp.sqrt(var + BN_EPS)
        y = y * g.reshape(1, -1, 1, 1) + t.reshape(1, -1, 1, 1)
        h = jnp.maximum(y, 0.0)
    return h


if __name__ == "__main__":
    key = jax.random.PRNGKey(0)
    key, kx = jax.random.split(key)

    # PointConv-style small shapes: (B, 3, nsample, npoint)
    B, C_in, H, W = 2, 3, 8, 16
    C_out = 16

    localized_xyz = jax.random.normal(kx, (B, C_in, H, W), jnp.float32)
    params = init_weightnet_params(key, C_in, C_out, hidden_unit=(8, 8))

    fwd = jax.jit(weightnet_forward)
    out = jax.block_until_ready(fwd(localized_xyz, params))

    ref = weightnet_reference(localized_xyz, params)
    assert out.shape == (B, C_out, H, W)
    # Slack covers MXU vs XLA f32 matmul rounding and E[y^2]-mean^2 variance path.
    assert jnp.allclose(out, ref, atol=2e-2, rtol=2e-2), "mismatch vs reference"

    print("KERNEL_OK")
</pallas_src>

<mosaic_0001>
module attributes {stable_mosaic.version = 11 : i64} {
  func.func @_stats_kernel(%arg0: i32, %arg1: i32, %arg2: memref<8x3xf32, #tpu.memory_space<vmem>>, %arg3: memref<1x3x128xf32, #tpu.memory_space<vmem>>, %arg4: memref<8x1xf32, #tpu.memory_space<vmem>>, %arg5: memref<8x1xf32, #tpu.memory_space<vmem>>) attributes {dimension_semantics = [#tpu.dimension_semantics<arbitrary>, #tpu.dimension_semantics<arbitrary>], iteration_bounds = array<i64: 2, 1>, scalar_prefetch = 0 : i64, scratch_operands = 0 : i64, tpu.core_type = #tpu.core_type<tc>, window_params = [{pipeline_mode = #tpu.pipeline_mode<synchronous>, transform_indices = @transform_0, window_bounds = array<i64: 8, 3>}, {transform_indices = @transform_1, window_bounds = array<i64: 1, 3, 128>}, {pipeline_mode = #tpu.pipeline_mode<synchronous>, transform_indices = @transform_2, window_bounds = array<i64: 8, 1>}, {pipeline_mode = #tpu.pipeline_mode<synchronous>, transform_indices = @transform_3, window_bounds = array<i64: 8, 1>}]} {
    %c0 = arith.constant 0 : index
    %c0_0 = arith.constant 0 : index
    %0 = vector.load %arg2[%c0, %c0_0] : memref<8x3xf32, #tpu.memory_space<vmem>>, vector<8x3xf32>
    %c0_1 = arith.constant 0 : index
    %c0_2 = arith.constant 0 : index
    %c0_3 = arith.constant 0 : index
    %1 = vector.load %arg3[%c0_1, %c0_2, %c0_3] : memref<1x3x128xf32, #tpu.memory_space<vmem>>, vector<1x3x128xf32>
    %2 = vector.shape_cast %1 : vector<1x3x128xf32> to vector<3x128xf32>
    %cst = arith.constant dense<0.000000e+00> : vector<8x128xf32>
    %3 = tpu.matmul %0, %2, %cst {dimension_numbers = #tpu.dot_dimension_numbers<[1], [0], [0], [1], [0, 0, 1, 1], [], []>} : vector<8x3xf32>, vector<3x128xf32>, vector<8x128xf32> -> vector<8x128xf32>
    %4 = tpu.iota {dimensions = array<i32: 1>} : vector<1x128xi32>
    %c128_i32 = arith.constant 128 : i32
    %5 = arith.muli %arg1, %c128_i32 : i32
    %c128_i32_4 = arith.constant 128 : i32
    %6 = arith.subi %c128_i32_4, %5 : i32
    %c128_i32_5 = arith.constant 128 : i32
    %7 = arith.minsi %c128_i32_5, %6 : i32
    %8 = vector.broadcast %7 : i32 to vector<1x128xi32>
    %9 = arith.cmpi slt, %4, %8 : vector<1x128xi32>
    %c0_i32 = arith.constant 0 : i32
    %10 = arith.cmpi eq, %arg0, %c0_i32 : i32
    %c0_i32_6 = arith.constant 0 : i32
    %11 = arith.cmpi eq, %arg1, %c0_i32_6 : i32
    %12 = arith.andi %10, %11 : i1
    %13 = arith.extui %12 : i1 to i32
    %c0_i32_7 = arith.constant 0 : i32
    %14 = arith.cmpi ne, %13, %c0_i32_7 : i32
    scf.if %14 {
      %cst_19 = arith.constant 0.000000e+00 : f32
      %30 = vector.broadcast %cst_19 : f32 to vector<8x1xf32>
      %c0_20 = arith.constant 0 : index
      %c0_21 = arith.constant 0 : index
      %31 = vector.load %arg4[%c0_20, %c0_21] : memref<8x1xf32, #tpu.memory_space<vmem>>, vector<8x1xf32>
      tpu.vector_store %arg4[%c0_20, %c0_21], %30 {strides = array<i32>} : memref<8x1xf32, #tpu.memory_space<vmem>>, vector<8x1xf32>,
      %cst_22 = arith.constant 0.000000e+00 : f32
      %32 = vector.broadcast %cst_22 : f32 to vector<8x1xf32>
      %c0_23 = arith.constant 0 : index
      %c0_24 = arith.constant 0 : index
      %33 = vector.load %arg5[%c0_23, %c0_24] : memref<8x1xf32, #tpu.memory_space<vmem>>, vector<8x1xf32>
      tpu.vector_store %arg5[%c0_23, %c0_24], %32 {strides = array<i32>} : memref<8x1xf32, #tpu.memory_space<vmem>>, vector<8x1xf32>,
    } else {
    }
    %cst_8 = arith.constant 0.000000e+00 : f32
    %15 = vector.shape_cast %9 : vector<1x128xi1> to vector<1x128xi1>
    %16 = vector.broadcast %15 : vector<1x128xi1> to vector<8x128xi1>
    %17 = vector.broadcast %cst_8 : f32 to vector<8x128xf32>
    %18 = arith.select %16, %3, %17 : vector<8x128xi1>, vector<8x128xf32>
    %c0_9 = arith.constant 0 : index
    %c0_10 = arith.constant 0 : index
    %19 = vector.load %arg4[%c0_9, %c0_10] : memref<8x1xf32, #tpu.memory_space<vmem>>, vector<8x1xf32>
    %cst_11 = arith.constant dense<0.000000e+00> : vector<8xf32>
    %20 = vector.multi_reduction <add>, %18, %cst_11 [1] : vector<8x128xf32> to vector<8xf32>
    %21 = vector.shape_cast %20 : vector<8xf32> to vector<8x1xf32>
    %22 = arith.addf %19, %21 : vector<8x1xf32>
    %c0_12 = arith.constant 0 : index
    %c0_13 = arith.constant 0 : index
    %23 = vector.load %arg4[%c0_12, %c0_13] : memref<8x1xf32, #tpu.memory_space<vmem>>, vector<8x1xf32>
    tpu.vector_store %arg4[%c0_12, %c0_13], %22 {strides = array<i32>} : memref<8x1xf32, #tpu.memory_space<vmem>>, vector<8x1xf32>,
    %c0_14 = arith.constant 0 : index
    %c0_15 = arith.constant 0 : index
    %24 = vector.load %arg5[%c0_14, %c0_15] : memref<8x1xf32, #tpu.memory_space<vmem>>, vector<8x1xf32>
    %25 = arith.mulf %18, %18 : vector<8x128xf32>
    %cst_16 = arith.constant dense<0.000000e+00> : vector<8xf32>
    %26 = vector.multi_reduction <add>, %25, %cst_16 [1] : vector<8x128xf32> to vector<8xf32>
    %27 = vector.shape_cast %26 : vector<8xf32> to vector<8x1xf32>
    %28 = arith.addf %24, %27 : vector<8x1xf32>
    %c0_17 = arith.constant 0 : index
    %c0_18 = arith.constant 0 : index
    %29 = vector.load %arg5[%c0_17, %c0_18] : memref<8x1xf32, #tpu.memory_space<vmem>>, vector<8x1xf32>
    tpu.vector_store %arg5[%c0_17, %c0_18], %28 {strides = array<i32>} : memref<8x1xf32, #tpu.memory_space<vmem>>, vector<8x1xf32>,
    return
  }
  func.func @transform_0(%arg0: i32, %arg1: i32) -> (i32, i32) {
    %c0_i32 = arith.constant 0 : i32
    %c0_i32_0 = arith.constant 0 : i32
    %c0_i32_1 = arith.constant 0 : i32
    return %c0_i32, %c0_i32_0 : i32, i32
  }
  func.func @transform_1(%arg0: i32, %arg1: i32) -> (i32, i32, i32) {
    %c0_i32 = arith.constant 0 : i32
    %c0_i32_0 = arith.constant 0 : i32
    return %arg0, %c0_i32, %arg1 : i32, i32, i32
  }
  func.func @transform_2(%arg0: i32, %arg1: i32) -> (i32, i32) {
    %c0_i32 = arith.constant 0 : i32
    %c0_i32_0 = arith.constant 0 : i32
    %c0_i32_1 = arith.constant 0 : i32
    return %c0_i32, %c0_i32_0 : i32, i32
  }
  func.func @transform_3(%arg0: i32, %arg1: i32) -> (i32, i32) {
    %c0_i32 = arith.constant 0 : i32
    %c0_i32_0 = arith.constant 0 : i32
    %c0_i32_1 = arith.constant 0 : i32
    return %c0_i32, %c0_i32_0 : i32, i32
  }
}

module attributes {stable_mosaic.version = 11 : i64} {
  func.func @_apply_stats_kernel(%arg0: i32, %arg1: i32, %arg2: memref<8x8xf32, #tpu.memory_space<vmem>>, %arg3: memref<8x1xf32, #tpu.memory_space<vmem>>, %arg4: memref<8x1xf32, #tpu.memory_space<vmem>>, %arg5: memref<16x8xf32, #tpu.memory_space<vmem>>, %arg6: memref<1x8x128xf32, #tpu.memory_space<vmem>>, %arg7: memref<1x8x128xf32, #tpu.memory_space<vmem>>, %arg8: memref<16x1xf32, #tpu.memory_space<vmem>>, %arg9: memref<16x1xf32, #tpu.memory_space<vmem>>) attributes {dimension_semantics = [#tpu.dimension_semantics<arbitrary>, #tpu.dimension_semantics<arbitrary>], iteration_bounds = array<i64: 2, 1>, scalar_prefetch = 0 : i64, scratch_operands = 0 : i64, tpu.core_type = #tpu.core_type<tc>, window_params = [{pipeline_mode = #tpu.pipeline_mode<synchronous>, transform_indices = @transform_0, window_bounds = array<i64: 8, 8>}, {pipeline_mode = #tpu.pipeline_mode<synchronous>, transform_indices = @transform_1, window_bounds = array<i64: 8, 1>}, {pipeline_mode = #tpu.pipeline_mode<synchronous>, transform_indices = @transform_2, window_bounds = array<i64: 8, 1>}, {pipeline_mode = #tpu.pipeline_mode<synchronous>, transform_indices = @transform_3, window_bounds = array<i64: 16, 8>}, {transform_indices = @transform_4, window_bounds = array<i64: 1, 8, 128>}, {transform_indices = @transform_5, window_bounds = array<i64: 1, 8, 128>}, {pipeline_mode = #tpu.pipeline_mode<synchronous>, transform_indices = @transform_6, window_bounds = array<i64: 16, 1>}, {pipeline_mode = #tpu.pipeline_mode<synchronous>, transform_indices = @transform_7, window_bounds = array<i64: 16, 1>}]} {
    %c0 = arith.constant 0 : index
    %c0_0 = arith.constant 0 : index
    %0 = vector.load %arg2[%c0, %c0_0] : memref<8x8xf32, #tpu.memory_space<vmem>>, vector<8x8xf32>
    %c0_1 = arith.constant 0 : index
    %c0_2 = arith.constant 0 : index
    %c0_3 = arith.constant 0 : index
    %1 = vector.load %arg6[%c0_1, %c0_2, %c0_3] : memref<1x8x128xf32, #tpu.memory_space<vmem>>, vector<1x8x128xf32>
    %2 = vector.shape_cast %1 : vector<1x8x128xf32> to vector<8x128xf32>
    %cst = arith.constant dense<0.000000e+00> : vector<8x128xf32>
    %3 = tpu.matmul %0, %2, %cst {dimension_numbers = #tpu.dot_dimension_numbers<[1], [0], [0], [1], [0, 0, 1, 1], [], []>} : vector<8x8xf32>, vector<8x128xf32>, vector<8x128xf32> -> vector<8x128xf32>
    %c0_4 = arith.constant 0 : index
    %c0_5 = arith.constant 0 : index
    %4 = vector.load %arg3[%c0_4, %c0_5] : memref<8x1xf32, #tpu.memory_space<vmem>>, vector<8x1xf32>
    %5 = vector.broadcast %4 : vector<8x1xf32> to vector<8x128xf32>
    %6 = arith.mulf %3, %5 : vector<8x128xf32>
    %c0_6 = arith.constant 0 : index
    %c0_7 = arith.constant 0 : index
    %7 = vector.load %arg4[%c0_6, %c0_7] : memref<8x1xf32, #tpu.memory_space<vmem>>, vector<8x1xf32>
    %8 = vector.broadcast %7 : vector<8x1xf32> to vector<8x128xf32>
    %9 = arith.addf %6, %8 : vector<8x128xf32>
    %cst_8 = arith.constant 0.000000e+00 : f32
    %10 = vector.broadcast %cst_8 : f32 to vector<8x128xf32>
    %11 = arith.maximumf %9, %10 : vector<8x128xf32>
    %c0_9 = arith.constant 0 : index
    %c0_10 = arith.constant 0 : index
    %c0_11 = arith.constant 0 : index
    %12 = vector.load %arg7[%c0_9, %c0_10, %c0_11] : memref<1x8x128xf32, #tpu.memory_space<vmem>>, vector<1x8x128xf32>
    %13 = vector.shape_cast %12 : vector<1x8x128xf32> to vector<8x128xf32>
    %14 = vector.shape_cast %11 : vector<8x128xf32> to vector<1x8x128xf32>
    tpu.vector_store %arg7[%c0_9, %c0_10, %c0_11], %14 {strides = array<i32>} : memref<1x8x128xf32, #tpu.memory_space<vmem>>, vector<1x8x128xf32>,
    %c0_12 = arith.constant 0 : index
    %c0_13 = arith.constant 0 : index
    %15 = vector.load %arg5[%c0_12, %c0_13] : memref<16x8xf32, #tpu.memory_space<vmem>>, vector<16x8xf32>
    %cst_14 = arith.constant dense<0.000000e+00> : vector<16x128xf32>
    %16 = tpu.matmul %15, %11, %cst_14 {dimension_numbers = #tpu.dot_dimension_numbers<[1], [0], [0], [1], [0, 0, 1, 1], [], []>} : vector<16x8xf32>, vector<8x128xf32>, vector<16x128xf32> -> vector<16x128xf32>
    %17 = tpu.iota {dimensions = array<i32: 1>} : vector<1x128xi32>
    %c128_i32 = arith.constant 128 : i32
    %18 = arith.muli %arg1, %c128_i32 : i32
    %c128_i32_15 = arith.constant 128 : i32
    %19 = arith.subi %c128_i32_15, %18 : i32
    %c128_i32_16 = arith.constant 128 : i32
    %20 = arith.minsi %c128_i32_16, %19 : i32
    %21 = vector.broadcast %20 : i32 to vector<1x128xi32>
    %22 = arith.cmpi slt, %17, %21 : vector<1x128xi32>
    %c0_i32 = arith.constant 0 : i32
    %23 = arith.cmpi eq, %arg0, %c0_i32 : i32
    %c0_i32_17 = arith.constant 0 : i32
    %24 = arith.cmpi eq, %arg1, %c0_i32_17 : i32
    %25 = arith.andi %23, %24 : i1
    %26 = arith.extui %25 : i1 to i32
    %c0_i32_18 = arith.constant 0 : i32
    %27 = arith.cmpi ne, %26, %c0_i32_18 : i32
    scf.if %27 {
      %cst_30 = arith.constant 0.000000e+00 : f32
      %43 = vector.broadcast %cst_30 : f32 to vector<16x1xf32>
      %c0_31 = arith.constant 0 : index
      %c0_32 = arith.constant 0 : index
      %44 = vector.load %arg8[%c0_31, %c0_32] : memref<16x1xf32, #tpu.memory_space<vmem>>, vector<16x1xf32>
      tpu.vector_store %arg8[%c0_31, %c0_32], %43 {strides = array<i32>} : memref<16x1xf32, #tpu.memory_space<vmem>>, vector<16x1xf32>,
      %cst_33 = arith.constant 0.000000e+00 : f32
      %45 = vector.broadcast %cst_33 : f32 to vector<16x1xf32>
      %c0_34 = arith.constant 0 : index
      %c0_35 = arith.constant 0 : index
      %46 = vector.load %arg9[%c0_34, %c0_35] : memref<16x1xf32, #tpu.memory_space<vmem>>, vector<16x1xf32>
      tpu.vector_store %arg9[%c0_34, %c0_35], %45 {strides = array<i32>} : memref<16x1xf32, #tpu.memory_space<vmem>>, vector<16x1xf32>,
    } else {
    }
    %cst_19 = arith.constant 0.000000e+00 : f32
    %28 = vector.shape_cast %22 : vector<1x128xi1> to vector<1x128xi1>
    %29 = vector.broadcast %28 : vector<1x128xi1> to vector<16x128xi1>
    %30 = vector.broadcast %cst_19 : f32 to vector<16x128xf32>
    %31 = arith.select %29, %16, %30 : vector<16x128xi1>, vector<16x128xf32>
    %c0_20 = arith.constant 0 : index
    %c0_21 = arith.constant 0 : index
    %32 = vector.load %arg8[%c0_20, %c0_21] : memref<16x1xf32, #tpu.memory_space<vmem>>, vector<16x1xf32>
    %cst_22 = arith.constant dense<0.000000e+00> : vector<16xf32>
    %33 = vector.multi_reduction <add>, %31, %cst_22 [1] : vector<16x128xf32> to vector<16xf32>
    %34 = vector.shape_cast %33 : vector<16xf32> to vector<16x1xf32>
    %35 = arith.addf %32, %34 : vector<16x1xf32>
    %c0_23 = arith.constant 0 : index
    %c0_24 = arith.constant 0 : index
    %36 = vector.load %arg8[%c0_23, %c0_24] : memref<16x1xf32, #tpu.memory_space<vmem>>, vector<16x1xf32>
    tpu.vector_store %arg8[%c0_23, %c0_24], %35 {strides = array<i32>} : memref<16x1xf32, #tpu.memory_space<vmem>>, vector<16x1xf32>,
    %c0_25 = arith.constant 0 : index
    %c0_26 = arith.constant 0 : index
    %37 = vector.load %arg9[%c0_25, %c0_26] : memref<16x1xf32, #tpu.memory_space<vmem>>, vector<16x1xf32>
    %38 = arith.mulf %31, %31 : vector<16x128xf32>
    %cst_27 = arith.constant dense<0.000000e+00> : vector<16xf32>
    %39 = vector.multi_reduction <add>, %38, %cst_27 [1] : vector<16x128xf32> to vector<16xf32>
    %40 = vector.shape_cast %39 : vector<16xf32> to vector<16x1xf32>
    %41 = arith.addf %37, %40 : vector<16x1xf32>
    %c0_28 = arith.constant 0 : index
    %c0_29 = arith.constant 0 : index
    %42 = vector.load %arg9[%c0_28, %c0_29] : memref<16x1xf32, #tpu.memory_space<vmem>>, vector<16x1xf32>
    tpu.vector_store %arg9[%c0_28, %c0_29], %41 {strides = array<i32>} : memref<16x1xf32, #tpu.memory_space<vmem>>, vector<16x1xf32>,
    return
  }
  func.func @transform_0(%arg0: i32, %arg1: i32) -> (i32, i32) {
    %c0_i32 = arith.constant 0 : i32
    %c0_i32_0 = arith.constant 0 : i32
    %c0_i32_1 = arith.constant 0 : i32
    return %c0_i32, %c0_i32_0 : i32, i32
  }
  func.func @transform_1(%arg0: i32, %arg1: i32) -> (i32, i32) {
    %c0_i32 = arith.constant 0 : i32
    %c0_i32_0 = arith.constant 0 : i32
    %c0_i32_1 = arith.constant 0 : i32
    return %c0_i32, %c0_i32_0 : i32, i32
  }
  func.func @transform_2(%arg0: i32, %arg1: i32) -> (i32, i32) {
    %c0_i32 = arith.constant 0 : i32
    %c0_i32_0 = arith.constant 0 : i32
    %c0_i32_1 = arith.constant 0 : i32
    return %c0_i32, %c0_i32_0 : i32, i32
  }
  func.func @transform_3(%arg0: i32, %arg1: i32) -> (i32, i32) {
    %c0_i32 = arith.constant 0 : i32
    %c0_i32_0 = arith.constant 0 : i32
    %c0_i32_1 = arith.constant 0 : i32
    return %c0_i32, %c0_i32_0 : i32, i32
  }
  func.func @transform_4(%arg0: i32, %arg1: i32) -> (i32, i32, i32) {
    %c0_i32 = arith.constant 0 : i32
    %c0_i32_0 = arith.constant 0 : i32
    return %arg0, %c0_i32, %arg1 : i32, i32, i32
  }
  func.func @transform_5(%arg0: i32, %arg1: i32) -> (i32, i32, i32) {
    %c0_i32 = arith.constant 0 : i32
    %c0_i32_0 = arith.constant 0 : i32
    return %arg0, %c0_i32, %arg1 : i32, i32, i32
  }
  func.func @transform_6(%arg0: i32, %arg1: i32) -> (i32, i32) {
    %c0_i32 = arith.constant 0 : i32
    %c0_i32_0 = arith.constant 0 : i32
    %c0_i32_1 = arith.constant 0 : i32
    return %c0_i32, %c0_i32_0 : i32, i32
  }
  func.func @transform_7(%arg0: i32, %arg1: i32) -> (i32, i32) {
    %c0_i32 = arith.constant 0 : i32
    %c0_i32_0 = arith.constant 0 : i32
    %c0_i32_1 = arith.constant 0 : i32
    return %c0_i32, %c0_i32_0 : i32, i32
  }
}

module attributes {stable_mosaic.version = 11 : i64} {
  func.func @_apply_stats_kernel(%arg0: i32, %arg1: i32, %arg2: memref<8x3xf32, #tpu.memory_space<vmem>>, %arg3: memref<8x1xf32, #tpu.memory_space<vmem>>, %arg4: memref<8x1xf32, #tpu.memory_space<vmem>>, %arg5: memref<8x8xf32, #tpu.memory_space<vmem>>, %arg6: memref<1x3x128xf32, #tpu.memory_space<vmem>>, %arg7: memref<1x8x128xf32, #tpu.memory_space<vmem>>, %arg8: memref<8x1xf32, #tpu.memory_space<vmem>>, %arg9: memref<8x1xf32, #tpu.memory_space<vmem>>) attributes {dimension_semantics = [#tpu.dimension_semantics<arbitrary>, #tpu.dimension_semantics<arbitrary>], iteration_bounds = array<i64: 2, 1>, scalar_prefetch = 0 : i64, scratch_operands = 0 : i64, tpu.core_type = #tpu.core_type<tc>, window_params = [{pipeline_mode = #tpu.pipeline_mode<synchronous>, transform_indices = @transform_0, window_bounds = array<i64: 8, 3>}, {pipeline_mode = #tpu.pipeline_mode<synchronous>, transform_indices = @transform_1, window_bounds = array<i64: 8, 1>}, {pipeline_mode = #tpu.pipeline_mode<synchronous>, transform_indices = @transform_2, window_bounds = array<i64: 8, 1>}, {pipeline_mode = #tpu.pipeline_mode<synchronous>, transform_indices = @transform_3, window_bounds = array<i64: 8, 8>}, {transform_indices = @transform_4, window_bounds = array<i64: 1, 3, 128>}, {transform_indices = @transform_5, window_bounds = array<i64: 1, 8, 128>}, {pipeline_mode = #tpu.pipeline_mode<synchronous>, transform_indices = @transform_6, window_bounds = array<i64: 8, 1>}, {pipeline_mode = #tpu.pipeline_mode<synchronous>, transform_indices = @transform_7, window_bounds = array<i64: 8, 1>}]} {
    %c0 = arith.constant 0 : index
    %c0_0 = arith.constant 0 : index
    %0 = vector.load %arg2[%c0, %c0_0] : memref<8x3xf32, #tpu.memory_space<vmem>>, vector<8x3xf32>
    %c0_1 = arith.constant 0 : index
    %c0_2 = arith.constant 0 : index
    %c0_3 = arith.constant 0 : index
    %1 = vector.load %arg6[%c0_1, %c0_2, %c0_3] : memref<1x3x128xf32, #tpu.memory_space<vmem>>, vector<1x3x128xf32>
    %2 = vector.shape_cast %1 : vector<1x3x128xf32> to vector<3x128xf32>
    %cst = arith.constant dense<0.000000e+00> : vector<8x128xf32>
    %3 = tpu.matmul %0, %2, %cst {dimension_numbers = #tpu.dot_dimension_numbers<[1], [0], [0], [1], [0, 0, 1, 1], [], []>} : vector<8x3xf32>, vector<3x128xf32>, vector<8x128xf32> -> vector<8x128xf32>
    %c0_4 = arith.constant 0 : index
    %c0_5 = arith.constant 0 : index
    %4 = vector.load %arg3[%c0_4, %c0_5] : memref<8x1xf32, #tpu.memory_space<vmem>>, vector<8x1xf32>
    %5 = vector.broadcast %4 : vector<8x1xf32> to vector<8x128xf32>
    %6 = arith.mulf %3, %5 : vector<8x128xf32>
    %c0_6 = arith.constant 0 : index
    %c0_7 = arith.constant 0 : index
    %7 = vector.load %arg4[%c0_6, %c0_7] : memref<8x1xf32, #tpu.memory_space<vmem>>, vector<8x1xf32>
    %8 = vector.broadcast %7 : vector<8x1xf32> to vector<8x128xf32>
    %9 = arith.addf %6, %8 : vector<8x128xf32>
    %cst_8 = arith.constant 0.000000e+00 : f32
    %10 = vector.broadcast %cst_8 : f32 to vector<8x128xf32>
    %11 = arith.maximumf %9, %10 : vector<8x128xf32>
    %c0_9 = arith.constant 0 : index
    %c0_10 = arith.constant 0 : index
    %c0_11 = arith.constant 0 : index
    %12 = vector.load %arg7[%c0_9, %c0_10, %c0_11] : memref<1x8x128xf32, #tpu.memory_space<vmem>>, vector<1x8x128xf32>
    %13 = vector.shape_cast %12 : vector<1x8x128xf32> to vector<8x128xf32>
    %14 = vector.shape_cast %11 : vector<8x128xf32> to vector<1x8x128xf32>
    tpu.vector_store %arg7[%c0_9, %c0_10, %c0_11], %14 {strides = array<i32>} : memref<1x8x128xf32, #tpu.memory_space<vmem>>, vector<1x8x128xf32>,
    %c0_12 = arith.constant 0 : index
    %c0_13 = arith.constant 0 : index
    %15 = vector.load %arg5[%c0_12, %c0_13] : memref<8x8xf32, #tpu.memory_space<vmem>>, vector<8x8xf32>
    %cst_14 = arith.constant dense<0.000000e+00> : vector<8x128xf32>
    %16 = tpu.matmul %15, %11, %cst_14 {dimension_numbers = #tpu.dot_dimension_numbers<[1], [0], [0], [1], [0, 0, 1, 1], [], []>} : vector<8x8xf32>, vector<8x128xf32>, vector<8x128xf32> -> vector<8x128xf32>
    %17 = tpu.iota {dimensions = array<i32: 1>} : vector<1x128xi32>
    %c128_i32 = arith.constant 128 : i32
    %18 = arith.muli %arg1, %c128_i32 : i32
    %c128_i32_15 = arith.constant 128 : i32
    %19 = arith.subi %c128_i32_15, %18 : i32
    %c128_i32_16 = arith.constant 128 : i32
    %20 = arith.minsi %c128_i32_16, %19 : i32
    %21 = vector.broadcast %20 : i32 to vector<1x128xi32>
    %22 = arith.cmpi slt, %17, %21 : vector<1x128xi32>
    %c0_i32 = arith.constant 0 : i32
    %23 = arith.cmpi eq, %arg0, %c0_i32 : i32
    %c0_i32_17 = arith.constant 0 : i32
    %24 = arith.cmpi eq, %arg1, %c0_i32_17 : i32
    %25 = arith.andi %23, %24 : i1
    %26 = arith.extui %25 : i1 to i32
    %c0_i32_18 = arith.constant 0 : i32
    %27 = arith.cmpi ne, %26, %c0_i32_18 : i32
    scf.if %27 {
      %cst_30 = arith.constant 0.000000e+00 : f32
      %43 = vector.broadcast %cst_30 : f32 to vector<8x1xf32>
      %c0_31 = arith.constant 0 : index
      %c0_32 = arith.constant 0 : index
      %44 = vector.load %arg8[%c0_31, %c0_32] : memref<8x1xf32, #tpu.memory_space<vmem>>, vector<8x1xf32>
      tpu.vector_store %arg8[%c0_31, %c0_32], %43 {strides = array<i32>} : memref<8x1xf32, #tpu.memory_space<vmem>>, vector<8x1xf32>,
      %cst_33 = arith.constant 0.000000e+00 : f32
      %45 = vector.broadcast %cst_33 : f32 to vector<8x1xf32>
      %c0_34 = arith.constant 0 : index
      %c0_35 = arith.constant 0 : index
      %46 = vector.load %arg9[%c0_34, %c0_35] : memref<8x1xf32, #tpu.memory_space<vmem>>, vector<8x1xf32>
      tpu.vector_store %arg9[%c0_34, %c0_35], %45 {strides = array<i32>} : memref<8x1xf32, #tpu.memory_space<vmem>>, vector<8x1xf32>,
    } else {
    }
    %cst_19 = arith.constant 0.000000e+00 : f32
    %28 = vector.shape_cast %22 : vector<1x128xi1> to vector<1x128xi1>
    %29 = vector.broadcast %28 : vector<1x128xi1> to vector<8x128xi1>
    %30 = vector.broadcast %cst_19 : f32 to vector<8x128xf32>
    %31 = arith.select %29, %16, %30 : vector<8x128xi1>, vector<8x128xf32>
    %c0_20 = arith.constant 0 : index
    %c0_21 = arith.constant 0 : index
    %32 = vector.load %arg8[%c0_20, %c0_21] : memref<8x1xf32, #tpu.memory_space<vmem>>, vector<8x1xf32>
    %cst_22 = arith.constant dense<0.000000e+00> : vector<8xf32>
    %33 = vector.multi_reduction <add>, %31, %cst_22 [1] : vector<8x128xf32> to vector<8xf32>
    %34 = vector.shape_cast %33 : vector<8xf32> to vector<8x1xf32>
    %35 = arith.addf %32, %34 : vector<8x1xf32>
    %c0_23 = arith.constant 0 : index
    %c0_24 = arith.constant 0 : index
    %36 = vector.load %arg8[%c0_23, %c0_24] : memref<8x1xf32, #tpu.memory_space<vmem>>, vector<8x1xf32>
    tpu.vector_store %arg8[%c0_23, %c0_24], %35 {strides = array<i32>} : memref<8x1xf32, #tpu.memory_space<vmem>>, vector<8x1xf32>,
    %c0_25 = arith.constant 0 : index
    %c0_26 = arith.constant 0 : index
    %37 = vector.load %arg9[%c0_25, %c0_26] : memref<8x1xf32, #tpu.memory_space<vmem>>, vector<8x1xf32>
    %38 = arith.mulf %31, %31 : vector<8x128xf32>
    %cst_27 = arith.constant dense<0.000000e+00> : vector<8xf32>
    %39 = vector.multi_reduction <add>, %38, %cst_27 [1] : vector<8x128xf32> to vector<8xf32>
    %40 = vector.shape_cast %39 : vector<8xf32> to vector<8x1xf32>
    %41 = arith.addf %37, %40 : vector<8x1xf32>
    %c0_28 = arith.constant 0 : index
    %c0_29 = arith.constant 0 : index
    %42 = vector.load %arg9[%c0_28, %c0_29] : memref<8x1xf32, #tpu.memory_space<vmem>>, vector<8x1xf32>
    tpu.vector_store %arg9[%c0_28, %c0_29], %41 {strides = array<i32>} : memref<8x1xf32, #tpu.memory_space<vmem>>, vector<8x1xf32>,
    return
  }
  func.func @transform_0(%arg0: i32, %arg1: i32) -> (i32, i32) {
    %c0_i32 = arith.constant 0 : i32
    %c0_i32_0 = arith.constant 0 : i32
    %c0_i32_1 = arith.constant 0 : i32
    return %c0_i32, %c0_i32_0 : i32, i32
  }
  func.func @transform_1(%arg0: i32, %arg1: i32) -> (i32, i32) {
    %c0_i32 = arith.constant 0 : i32
    %c0_i32_0 = arith.constant 0 : i32
    %c0_i32_1 = arith.constant 0 : i32
    return %c0_i32, %c0_i32_0 : i32, i32
  }
  func.func @transform_2(%arg0: i32, %arg1: i32) -> (i32, i32) {
    %c0_i32 = arith.constant 0 : i32
    %c0_i32_0 = arith.constant 0 : i32
    %c0_i32_1 = arith.constant 0 : i32
    return %c0_i32, %c0_i32_0 : i32, i32
  }
  func.func @transform_3(%arg0: i32, %arg1: i32) -> (i32, i32) {
    %c0_i32 = arith.constant 0 : i32
    %c0_i32_0 = arith.constant 0 : i32
    %c0_i32_1 = arith.constant 0 : i32
    return %c0_i32, %c0_i32_0 : i32, i32
  }
  func.func @transform_4(%arg0: i32, %arg1: i32) -> (i32, i32, i32) {
    %c0_i32 = arith.constant 0 : i32
    %c0_i32_0 = arith.constant 0 : i32
    return %arg0, %c0_i32, %arg1 : i32, i32, i32
  }
  func.func @transform_5(%arg0: i32, %arg1: i32) -> (i32, i32, i32) {
    %c0_i32 = arith.constant 0 : i32
    %c0_i32_0 = arith.constant 0 : i32
    return %arg0, %c0_i32, %arg1 : i32, i32, i32
  }
  func.func @transform_6(%arg0: i32, %arg1: i32) -> (i32, i32) {
    %c0_i32 = arith.constant 0 : i32
    %c0_i32_0 = arith.constant 0 : i32
    %c0_i32_1 = arith.constant 0 : i32
    return %c0_i32, %c0_i32_0 : i32, i32
  }
  func.func @transform_7(%arg0: i32, %arg1: i32) -> (i32, i32) {
    %c0_i32 = arith.constant 0 : i32
    %c0_i32_0 = arith.constant 0 : i32
    %c0_i32_1 = arith.constant 0 : i32
    return %c0_i32, %c0_i32_0 : i32, i32
  }
}

module attributes {stable_mosaic.version = 11 : i64} {
  func.func @_apply_kernel(%arg0: i32, %arg1: i32, %arg2: memref<16x8xf32, #tpu.memory_space<vmem>>, %arg3: memref<16x1xf32, #tpu.memory_space<vmem>>, %arg4: memref<16x1xf32, #tpu.memory_space<vmem>>, %arg5: memref<1x8x128xf32, #tpu.memory_space<vmem>>, %arg6: memref<1x16x128xf32, #tpu.memory_space<vmem>>) attributes {dimension_semantics = [#tpu.dimension_semantics<parallel>, #tpu.dimension_semantics<parallel>], iteration_bounds = array<i64: 2, 1>, scalar_prefetch = 0 : i64, scratch_operands = 0 : i64, tpu.core_type = #tpu.core_type<tc>, window_params = [{pipeline_mode = #tpu.pipeline_mode<synchronous>, transform_indices = @transform_0, window_bounds = array<i64: 16, 8>}, {pipeline_mode = #tpu.pipeline_mode<synchronous>, transform_indices = @transform_1, window_bounds = array<i64: 16, 1>}, {pipeline_mode = #tpu.pipeline_mode<synchronous>, transform_indices = @transform_2, window_bounds = array<i64: 16, 1>}, {transform_indices = @transform_3, window_bounds = array<i64: 1, 8, 128>}, {transform_indices = @transform_4, window_bounds = array<i64: 1, 16, 128>}]} {
    %c0 = arith.constant 0 : index
    %c0_0 = arith.constant 0 : index
    %0 = vector.load %arg2[%c0, %c0_0] : memref<16x8xf32, #tpu.memory_space<vmem>>, vector<16x8xf32>
    %c0_1 = arith.constant 0 : index
    %c0_2 = arith.constant 0 : index
    %c0_3 = arith.constant 0 : index
    %1 = vector.load %arg5[%c0_1, %c0_2, %c0_3] : memref<1x8x128xf32, #tpu.memory_space<vmem>>, vector<1x8x128xf32>
    %2 = vector.shape_cast %1 : vector<1x8x128xf32> to vector<8x128xf32>
    %cst = arith.constant dense<0.000000e+00> : vector<16x128xf32>
    %3 = tpu.matmul %0, %2, %cst {dimension_numbers = #tpu.dot_dimension_numbers<[1], [0], [0], [1], [0, 0, 1, 1], [], []>} : vector<16x8xf32>, vector<8x128xf32>, vector<16x128xf32> -> vector<16x128xf32>
    %c0_4 = arith.constant 0 : index
    %c0_5 = arith.constant 0 : index
    %4 = vector.load %arg3[%c0_4, %c0_5] : memref<16x1xf32, #tpu.memory_space<vmem>>, vector<16x1xf32>
    %5 = vector.broadcast %4 : vector<16x1xf32> to vector<16x128xf32>
    %6 = arith.mulf %3, %5 : vector<16x128xf32>
    %c0_6 = arith.constant 0 : index
    %c0_7 = arith.constant 0 : index
    %7 = vector.load %arg4[%c0_6, %c0_7] : memref<16x1xf32, #tpu.memory_space<vmem>>, vector<16x1xf32>
    %8 = vector.broadcast %7 : vector<16x1xf32> to vector<16x128xf32>
    %9 = arith.addf %6, %8 : vector<16x128xf32>
    %cst_8 = arith.constant 0.000000e+00 : f32
    %10 = vector.broadcast %cst_8 : f32 to vector<16x128xf32>
    %11 = arith.maximumf %9, %10 : vector<16x128xf32>
    %c0_9 = arith.constant 0 : index
    %c0_10 = arith.constant 0 : index
    %c0_11 = arith.constant 0 : index
    %12 = vector.load %arg6[%c0_9, %c0_10, %c0_11] : memref<1x16x128xf32, #tpu.memory_space<vmem>>, vector<1x16x128xf32>
    %13 = vector.shape_cast %12 : vector<1x16x128xf32> to vector<16x128xf32>
    %14 = vector.shape_cast %11 : vector<16x128xf32> to vector<1x16x128xf32>
    tpu.vector_store %arg6[%c0_9, %c0_10, %c0_11], %14 {strides = array<i32>} : memref<1x16x128xf32, #tpu.memory_space<vmem>>, vector<1x16x128xf32>,
    return
  }
  func.func @transform_0(%arg0: i32, %arg1: i32) -> (i32, i32) {
    %c0_i32 = arith.constant 0 : i32
    %c0_i32_0 = arith.constant 0 : i32
    %c0_i32_1 = arith.constant 0 : i32
    return %c0_i32, %c0_i32_0 : i32, i32
  }
  func.func @transform_1(%arg0: i32, %arg1: i32) -> (i32, i32) {
    %c0_i32 = arith.constant 0 : i32
    %c0_i32_0 = arith.constant 0 : i32
    %c0_i32_1 = arith.constant 0 : i32
    return %c0_i32, %c0_i32_0 : i32, i32
  }
  func.func @transform_2(%arg0: i32, %arg1: i32) -> (i32, i32) {
    %c0_i32 = arith.constant 0 : i32
    %c0_i32_0 = arith.constant 0 : i32
    %c0_i32_1 = arith.constant 0 : i32
    return %c0_i32, %c0_i32_0 : i32, i32
  }
  func.func @transform_3(%arg0: i32, %arg1: i32) -> (i32, i32, i32) {
    %c0_i32 = arith.constant 0 : i32
    %c0_i32_0 = arith.constant 0 : i32
    return %arg0, %c0_i32, %arg1 : i32, i32, i32
  }
  func.func @transform_4(%arg0: i32, %arg1: i32) -> (i32, i32, i32) {
    %c0_i32 = arith.constant 0 : i32
    %c0_i32_0 = arith.constant 0 : i32
    return %arg0, %c0_i32, %arg1 : i32, i32, i32
  }
}

</mosaic_0001>

<llo_original>
// kernel: weightnet_forward.4
$region0: #{weightnet_forward.4}
  #allocation0 [shape = 'u32[]', space=smem, size = 0x4, offset = 0x4, fixed_abs, tag = 'smem constant byte address 0x4 - core index']
  #allocation1 [shape = 'u32[72,128]{1,0:T(1,128)}', space=vmem, size = 0x9000, scoped, tag = 'internal scratch']
  %s0 = inlined_call_operand.vmem [shape: f32[8,3], index: 0, kind: input, shape index: {}]
  %s1 = inlined_call_operand.vmem [shape: f32[2,3,128], index: 1, kind: input, shape index: {}]
  %s2 = inlined_call_operand.vmem [shape: f32[8,1], index: 2, kind: output, shape index: {0}]
  %s3 = inlined_call_operand.vmem [shape: f32[8,1], index: 3, kind: output, shape index: {1}]
  %4 = xla_tuple %s2, %s3
  %s5 = sld [smem:[#allocation0]]
  $region53: #{weightnet_forward.4} parent=0
    _
  %s7 = ssub.s32 1, %s5
  %s8 = scalar_select 0, %s7, %s5
  loop: start=0, step=1, limit=4
  $region2: #{weightnet_forward.4} parent=0 // loop_pre_header
    _
  $region3: #{weightnet_forward.4} parent=0 // loop_header
    %s10 = sphi 0, %s14
    %p11 = scmp.ge.s32.totalorder %s10, 4
    %s17 = sphi 0, %s29
    %s18 = sphi 0, %s25
    %s19 = sphi 0, %s17
    %s20 = sphi 0, %s18
    %s21 = sphi 0, %s19
    %s22 = sphi 0, %s20
    %s30 = sphi 0, %s30
    %s32 = sphi 0, %s30
    %s33 = sphi 0, %s32
    %s47 = sphi 0, %s33
    %s55 = sphi 0, %s57
    %s58 = sphi 0, %s55
    %s59 = sphi 0, %s58
    %s75 = sphi 0, %s59
    %s79 = sphi 0, %s79
    %s81 = sphi 0, %s79
    %s82 = sphi 0, %s81
    %s96 = sphi 0, %s82
    %s100 = sphi 0, %s100
    %s102 = sphi 0, %s100
    %s103 = sphi 0, %s102
    %s117 = sphi 0, %s103
  $region4: #{weightnet_forward.4} parent=0 // loop_header_branch
    %13 = sbr.rel (%p11) target = $region8
  $region5: #{weightnet_forward.4} parent=0 // loop_body
    %s15 = ssub.s32 %s10, 1
    %s16 = ssub.s32 %s10, 2
    %s23 = sadd.s32 1, %s18
    %p24 = scmp.ge.s32.totalorder %s23, 1
    %s25 = scalar_select %p24, 0, %s23
    %s26 = sadd.s32 1, %s17
    %s27 = scalar_select %p24, %s26, %s17
    %p28 = scmp.ge.s32.totalorder %s27, 2
    %s29 = scalar_select %p28, 0, %s27
    %s31 = sadd.s32 %s30, 1
    %p34 = scmp.eq.s32.totalorder %s10, 1
    %p35 = scmp.ne.s32.totalorder %s30, %s32
    %p36 = scmp.eq.s32.totalorder %s10, 0
    %p37 = por %p35, %p36
    %p38 = scmp.ne.s32.totalorder %s30, %s32
    %p39 = scmp.eq.s32.totalorder %s15, 1
    %p40 = por %p38, %p39
    %p41 = scmp.ne.s32.totalorder %s32, %s33
    %p42 = scmp.eq.s32.totalorder %s15, 0
    %p43 = por %p41, %p42
    %p44 = scmp.ne.s32.totalorder %s32, %s33
    %p45 = scmp.eq.s32.totalorder %s16, 1
    %p46 = por %p44, %p45
    %p48 = scmp.ne.s32.totalorder %s33, %s47
    %p49 = scmp.eq.s32.totalorder %s16, 0
    %p50 = por %p48, %p49
    %s51 = ssub.s32 %s17, %s29
    %s52 = ssub.s32 %s18, %s25
    %s53 = sor.u32 %s51, %s52
    %p54 = scmp.eq.s32.totalorder %s53, 0
    %s56 = sadd.s32 %s55, 1
    %s57 = scalar_select %p54, %s55, %s56
    %p60 = pneg %p54
    %p61 = scmp.eq.s32.totalorder %s10, 1
    %p62 = por %p60, %p61
    %p63 = scmp.ne.s32.totalorder %s55, %s58
    %p64 = scmp.eq.s32.totalorder %s10, 0
    %p65 = por %p63, %p64
    %p66 = scmp.ne.s32.totalorder %s55, %s58
    %p67 = scmp.eq.s32.totalorder %s15, 1
    %p68 = por %p66, %p67
    %p69 = scmp.ne.s32.totalorder %s58, %s59
    %p70 = scmp.eq.s32.totalorder %s15, 0
    %p71 = por %p69, %p70
    %p72 = scmp.ne.s32.totalorder %s58, %s59
    %p73 = scmp.eq.s32.totalorder %s16, 1
    %p74 = por %p72, %p73
    %p76 = scmp.ne.s32.totalorder %s59, %s75
    %p77 = scmp.eq.s32.totalorder %s16, 0
    %p78 = por %p76, %p77
    %s80 = sadd.s32 %s79, 1
    %p83 = scmp.eq.s32.totalorder %s10, 1
    %p84 = scmp.ne.s32.totalorder %s79, %s81
    %p85 = scmp.eq.s32.totalorder %s10, 0
    %p86 = por %p84, %p85
    %p87 = scmp.ne.s32.totalorder %s79, %s81
    %p88 = scmp.eq.s32.totalorder %s15, 1
    %p89 = por %p87, %p88
    %p90 = scmp.ne.s32.totalorder %s81, %s82
    %p91 = scmp.eq.s32.totalorder %s15, 0
    %p92 = por %p90, %p91
    %p93 = scmp.ne.s32.totalorder %s81, %s82
    %p94 = scmp.eq.s32.totalorder %s16, 1
    %p95 = por %p93, %p94
    %p97 = scmp.ne.s32.totalorder %s82, %s96
    %p98 = scmp.eq.s32.totalorder %s16, 0
    %p99 = por %p97, %p98
    %s101 = sadd.s32 %s100, 1
    %p104 = scmp.eq.s32.totalorder %s10, 1
    %p105 = scmp.ne.s32.totalorder %s100, %s102
    %p106 = scmp.eq.s32.totalorder %s10, 0
    %p107 = por %p105, %p106
    %p108 = scmp.ne.s32.totalorder %s100, %s102
    %p109 = scmp.eq.s32.totalorder %s15, 1
    %p110 = por %p108, %p109
    %p111 = scmp.ne.s32.totalorder %s102, %s103
    %p112 = scmp.eq.s32.totalorder %s15, 0
    %p113 = por %p111, %p112
    %p114 = scmp.ne.s32.totalorder %s102, %s103
    %p115 = scmp.eq.s32.totalorder %s16, 1
    %p116 = por %p114, %p115
    %p118 = scmp.ne.s32.totalorder %s103, %s117
    %p119 = scmp.eq.s32.totalorder %s16, 0
    %p120 = por %p118, %p119
    %p121 = scmp.le.s32.totalorder 1, %s10
    %p122 = scmp.lt.s32.totalorder %s10, 3
    %p123 = pnand %p121, %p122
    %p124 = pneg %p123
    // Predicated region
    $region9: #{weightnet_forward.4} parent=5 // pred_check
      _
    $region10: #{weightnet_forward.4} parent=5 // pred_check_branch
      %126 = sbr.rel (%p123) target = $region12
    $region11: #{weightnet_forward.4} parent=5 // pred_region
      %s127 = ssub.s32 %s10, 1
      // Predicated region
      $region13: #{weightnet_forward.4} parent=11 // pred_check
        %p128 = pneg %p43
      $region14: #{weightnet_forward.4} parent=11 // pred_check_branch
        %130 = sbr.rel (%p128) target = $region16
      $region15: #{weightnet_forward.4} parent=11 // pred_region
        _
      $region16: #{weightnet_forward.4} parent=11 // pred_fallthru
        _
    $region12: #{weightnet_forward.4} parent=5 // pred_fallthru
      _
    %p131 = scmp.lt.s32.totalorder %s10, 2
    // Predicated region
    $region17: #{weightnet_forward.4} parent=5 // pred_check
      %p132 = pneg %p131
    $region18: #{weightnet_forward.4} parent=5 // pred_check_branch
      %134 = sbr.rel (%p132) target = $region20
    $region19: #{weightnet_forward.4} parent=5 // pred_region
      // Predicated region
      $region21: #{weightnet_forward.4} parent=19 // pred_check
        %p135 = pneg %p65
      $region22: #{weightnet_forward.4} parent=19 // pred_check_branch
        %137 = sbr.rel (%p135) target = $region24
      $region23: #{weightnet_forward.4} parent=19 // pred_region
        %p138 = scmp.lt.s32.totalorder %s17, 1
        %s139 = scalar_select %p138, %s17, 1
        %p140 = scmp.lt.s32.totalorder %s18, 0
        %s141 = scalar_select %p140, %s18, 0
        %s142 = sadd.s32 %s141, %s139
        %s143 = smul.addr %s142, 4
        %s144 = scalar_lea.vmem %s1, %s143
      $region24: #{weightnet_forward.4} parent=19 // pred_fallthru
        _
    $region20: #{weightnet_forward.4} parent=5 // pred_fallthru
      _
    %p145 = scmp.le.s32.totalorder 1, %s10
    %p146 = scmp.lt.s32.totalorder %s10, 3
    %p147 = pnand %p145, %p146
    %p148 = pneg %p147
    // Predicated region
    $region25: #{weightnet_forward.4} parent=5 // pred_check
      _
    $region26: #{weightnet_forward.4} parent=5 // pred_check_branch
      %150 = sbr.rel (%p147) target = $region28
    $region27: #{weightnet_forward.4} parent=5 // pred_region
      %s151 = ssub.s32 %s10, 1
      %p152 = pneg %p43
      %p153 = pneg %p40
      %p154 = scmp.lt.s32.totalorder %s19, 1
      %s155 = scalar_select %p154, %s19, 1
      %p156 = scmp.lt.s32.totalorder %s20, 0
      %s157 = scalar_select %p156, %s20, 0
      %s158 = sadd.s32 %s157, %s155
      %s159 = smul.addr %s158, 4
      %s160 = scalar_lea.vmem %s1, %s159
      %p161 = pneg %p71
      %p162 = pneg %p68
      %p163 = pneg %p92
      %p164 = pneg %p89
      %p165 = pneg %p113
      %p166 = pneg %p110
      %p167 = scmp.lt.s32.totalorder %s19, 1
      %s168 = scalar_select %p167, %s19, 1
      %p169 = scmp.lt.s32.totalorder %s20, 0
      %s170 = scalar_select %p169, %s20, 0
      %s171 = sadd.s32 %s170, %s168
      %s172 = smul.addr %s171, 4
      %s173 = scalar_lea.vmem %s1, %s172
      %v174 = vld [vmem:[%s0] sm:$0xff]
      %v175 = vld [vmem:[%s173] sm:$0x7]
      %vm176 = vcmask 23552
      %v178 = vsel %vm176, %v174, 0
      %vm180 = vcmask 1042432
      %v182 = vsel %vm180, %v175, 0
      %184 = vmatpush.msra.mxu0 0.0
      %185 = vmatpush.msra.mxu0 0.0
      %186 = vmatpush.msra.mxu0 0.0
      %187 = vmatpush.msra.mxu0 0.0
      %188 = vmatpush.msra.mxu0 0.0
      %189 = vmatpush.msra.mxu0 0.0
      %190 = vmatpush.msra.mxu0 0.0
      %191 = vmatpush.msra.mxu0 0.0
      %192 = vmatpush.msra.mxu0 0.0
      %193 = vmatpush.msra.mxu0 0.0
      %194 = vmatpush.msra.mxu0 0.0
      %195 = vmatpush.msra.mxu0 0.0
      %196 = vmatpush.msra.mxu0 0.0
      %197 = vmatpush.msra.mxu0 0.0
      %198 = vmatpush.msra.mxu0 0.0
      %199 = vmatpush.msra.mxu0 %v182
      %200 = vmatmul.f32.gmra.mxu0 %v178
      %v201 = vpop.f32.mrf.mxu0
      %v202 = vadd.f32 0.0, %v201
      %203 = vdwg.mxu0
      %v204 = vlaneseq
      %v205 = vand.u32 %v204, 127
      %s206 = smul.u32 %s20, 128
      %s207 = ssub.s32 128, %s206
      %p208 = scmp.lt.s32.totalorder %s207, 128
      %s209 = scalar_select %p208, %s207, 128
      %v210 = vstv %s209
      %vm211 = vcmp.lt.s32.totalorder %v205, %v210
      %p212 = scmp.eq.s32.totalorder %s19, 0
      %p213 = scmp.eq.s32.totalorder %s20, 0
      %p214 = pnand %p212, %p213
      %p215 = pneg %p214
      // Predicated region
      $region29: #{weightnet_forward.4} parent=27 // pred_check
        _
      $region30: #{weightnet_forward.4} parent=27 // pred_check_branch
        %217 = sbr.rel (%p214) target = $region32
      $region31: #{weightnet_forward.4} parent=27 // pred_region
        %vm218 = vcmask 7168
        %219 = vst.msk [vmem:[%s2] sm:$0xff] %vm218, 0.0
        %220 = vst.msk [vmem:[%s3] sm:$0xff] %vm218, 0.0
      $region32: #{weightnet_forward.4} parent=27 // pred_fallthru
        _
      %v221 = vsel %vm211, 1, 0
      %vm222 = vcmp.eq.s32.totalorder %v221, 1
      %v223 = vsel %vm222, %v202, 0.0
      %v224 = vld [vmem:[%s2] sm:$0xff]
      %225 = vadd.xlane.f32.xlu0 %v223
      %v226 = vpop.xlane.xlu0 %225
      %v227 = vadd.f32 %v224, %v226
      %vm228 = vcmask 7168
      %229 = vst.msk [vmem:[%s2] sm:$0xff] %vm228, %v227
      %v230 = vld [vmem:[%s3] sm:$0xff]
      %v231 = vmul.f32 %v223, %v223
      %232 = vadd.xlane.f32.xlu0 %v231
      %v233 = vpop.xlane.xlu0 %232
      %v234 = vadd.f32 %v230, %v233
      %235 = vst.msk [vmem:[%s3] sm:$0xff] %vm228, %v234
      // Predicated region
      $region33: #{weightnet_forward.4} parent=27 // pred_check
        %p236 = pneg %p89
      $region34: #{weightnet_forward.4} parent=27 // pred_check_branch
        %238 = sbr.rel (%p236) target = $region36
      $region35: #{weightnet_forward.4} parent=27 // pred_region
        _
      $region36: #{weightnet_forward.4} parent=27 // pred_fallthru
        _
      // Predicated region
      $region37: #{weightnet_forward.4} parent=27 // pred_check
        %p239 = pneg %p110
      $region38: #{weightnet_forward.4} parent=27 // pred_check_branch
        %241 = sbr.rel (%p239) target = $region40
      $region39: #{weightnet_forward.4} parent=27 // pred_region
        _
      $region40: #{weightnet_forward.4} parent=27 // pred_fallthru
        _
      // Predicated region
      $region41: #{weightnet_forward.4} parent=27 // pred_check
        %p242 = pneg %p89
      $region42: #{weightnet_forward.4} parent=27 // pred_check_branch
        %244 = sbr.rel (%p242) target = $region44
      $region43: #{weightnet_forward.4} parent=27 // pred_region
        _
      $region44: #{weightnet_forward.4} parent=27 // pred_fallthru
        _
      // Predicated region
      $region45: #{weightnet_forward.4} parent=27 // pred_check
        %p245 = pneg %p110
      $region46: #{weightnet_forward.4} parent=27 // pred_check_branch
        %247 = sbr.rel (%p245) target = $region48
      $region47: #{weightnet_forward.4} parent=27 // pred_region
        _
      $region48: #{weightnet_forward.4} parent=27 // pred_fallthru
        _
    $region28: #{weightnet_forward.4} parent=5 // pred_fallthru
      _
    %p248 = scmp.le.s32.totalorder 2, %s10
    // Predicated region
    $region49: #{weightnet_forward.4} parent=5 // pred_check
      %p249 = pneg %p248
    $region50: #{weightnet_forward.4} parent=5 // pred_check_branch
      %251 = sbr.rel (%p249) target = $region52
    $region51: #{weightnet_forward.4} parent=5 // pred_region
      %s252 = ssub.s32 %s10, 2
    $region52: #{weightnet_forward.4} parent=5 // pred_fallthru
      _
  $region6: #{weightnet_forward.4} parent=0 // loop_footer
    %s14 = sadd.s32 1, %s10
  $region7: #{weightnet_forward.4} parent=0 // loop_footer_branch
    %9 = sbr.rel target = $region3
  $region8: #{weightnet_forward.4} parent=0 // loop_exit
    _

// kernel: weightnet_forward.5
$region0: #{weightnet_forward.5}
  #allocation0 [shape = 'u32[]', space=smem, size = 0x4, offset = 0x4, fixed_abs, tag = 'smem constant byte address 0x4 - core index']
  #allocation1 [shape = 'u32[72,128]{1,0:T(1,128)}', space=vmem, size = 0x9000, scoped, tag = 'internal scratch']
  %s0 = inlined_call_operand.vmem [shape: f32[8,3], index: 0, kind: input, shape index: {}]
  %s1 = inlined_call_operand.vmem [shape: f32[8,1], index: 1, kind: input, shape index: {}]
  %s2 = inlined_call_operand.vmem [shape: f32[8,1], index: 2, kind: input, shape index: {}]
  %s3 = inlined_call_operand.vmem [shape: f32[8,8], index: 3, kind: input, shape index: {}]
  %s4 = inlined_call_operand.vmem [shape: f32[2,3,128], index: 4, kind: input, shape index: {}]
  %s5 = inlined_call_operand.vmem [shape: f32[2,8,128], index: 5, kind: output, shape index: {0}]
  %s6 = inlined_call_operand.vmem [shape: f32[8,1], index: 6, kind: output, shape index: {1}]
  %s7 = inlined_call_operand.vmem [shape: f32[8,1], index: 7, kind: output, shape index: {2}]
  %8 = xla_tuple %s5, %s6, %s7
  %s9 = sld [smem:[#allocation0]]
  $region73: #{weightnet_forward.5} parent=0
    _
  %s11 = ssub.s32 1, %s9
  %s12 = scalar_select 0, %s11, %s9
  loop: start=0, step=1, limit=4
  $region2: #{weightnet_forward.5} parent=0 // loop_pre_header
    _
  $region3: #{weightnet_forward.5} parent=0 // loop_header
    %s14 = sphi 0, %s18
    %p15 = scmp.ge.s32.totalorder %s14, 4
    %s21 = sphi 0, %s33
    %s22 = sphi 0, %s29
    %s23 = sphi 0, %s21
    %s24 = sphi 0, %s22
    %s25 = sphi 0, %s23
    %s26 = sphi 0, %s24
    %s34 = sphi 0, %s34
    %s36 = sphi 0, %s34
    %s37 = sphi 0, %s36
    %s51 = sphi 0, %s37
    %s55 = sphi 0, %s55
    %s57 = sphi 0, %s55
    %s58 = sphi 0, %s57
    %s72 = sphi 0, %s58
    %s76 = sphi 0, %s76
    %s78 = sphi 0, %s76
    %s79 = sphi 0, %s78
    %s93 = sphi 0, %s79
    %s97 = sphi 0, %s97
    %s99 = sphi 0, %s97
    %s100 = sphi 0, %s99
    %s114 = sphi 0, %s100
    %s122 = sphi 0, %s124
    %s125 = sphi 0, %s122
    %s126 = sphi 0, %s125
    %s142 = sphi 0, %s126
    %s150 = sphi 0, %s152
    %s153 = sphi 0, %s150
    %s154 = sphi 0, %s153
    %s170 = sphi 0, %s154
    %s174 = sphi 0, %s174
    %s176 = sphi 0, %s174
    %s177 = sphi 0, %s176
    %s191 = sphi 0, %s177
    %s195 = sphi 0, %s195
    %s197 = sphi 0, %s195
    %s198 = sphi 0, %s197
    %s212 = sphi 0, %s198
  $region4: #{weightnet_forward.5} parent=0 // loop_header_branch
    %17 = sbr.rel (%p15) target = $region8
  $region5: #{weightnet_forward.5} parent=0 // loop_body
    %s19 = ssub.s32 %s14, 1
    %s20 = ssub.s32 %s14, 2
    %s27 = sadd.s32 1, %s22
    %p28 = scmp.ge.s32.totalorder %s27, 1
    %s29 = scalar_select %p28, 0, %s27
    %s30 = sadd.s32 1, %s21
    %s31 = scalar_select %p28, %s30, %s21
    %p32 = scmp.ge.s32.totalorder %s31, 2
    %s33 = scalar_select %p32, 0, %s31
    %s35 = sadd.s32 %s34, 1
    %p38 = scmp.eq.s32.totalorder %s14, 1
    %p39 = scmp.ne.s32.totalorder %s34, %s36
    %p40 = scmp.eq.s32.totalorder %s14, 0
    %p41 = por %p39, %p40
    %p42 = scmp.ne.s32.totalorder %s34, %s36
    %p43 = scmp.eq.s32.totalorder %s19, 1
    %p44 = por %p42, %p43
    %p45 = scmp.ne.s32.totalorder %s36, %s37
    %p46 = scmp.eq.s32.totalorder %s19, 0
    %p47 = por %p45, %p46
    %p48 = scmp.ne.s32.totalorder %s36, %s37
    %p49 = scmp.eq.s32.totalorder %s20, 1
    %p50 = por %p48, %p49
    %p52 = scmp.ne.s32.totalorder %s37, %s51
    %p53 = scmp.eq.s32.totalorder %s20, 0
    %p54 = por %p52, %p53
    %s56 = sadd.s32 %s55, 1
    %p59 = scmp.eq.s32.totalorder %s14, 1
    %p60 = scmp.ne.s32.totalorder %s55, %s57
    %p61 = scmp.eq.s32.totalorder %s14, 0
    %p62 = por %p60, %p61
    %p63 = scmp.ne.s32.totalorder %s55, %s57
    %p64 = scmp.eq.s32.totalorder %s19, 1
    %p65 = por %p63, %p64
    %p66 = scmp.ne.s32.totalorder %s57, %s58
    %p67 = scmp.eq.s32.totalorder %s19, 0
    %p68 = por %p66, %p67
    %p69 = scmp.ne.s32.totalorder %s57, %s58
    %p70 = scmp.eq.s32.totalorder %s20, 1
    %p71 = por %p69, %p70
    %p73 = scmp.ne.s32.totalorder %s58, %s72
    %p74 = scmp.eq.s32.totalorder %s20, 0
    %p75 = por %p73, %p74
    %s77 = sadd.s32 %s76, 1
    %p80 = scmp.eq.s32.totalorder %s14, 1
    %p81 = scmp.ne.s32.totalorder %s76, %s78
    %p82 = scmp.eq.s32.totalorder %s14, 0
    %p83 = por %p81, %p82
    %p84 = scmp.ne.s32.totalorder %s76, %s78
    %p85 = scmp.eq.s32.totalorder %s19, 1
    %p86 = por %p84, %p85
    %p87 = scmp.ne.s32.totalorder %s78, %s79
    %p88 = scmp.eq.s32.totalorder %s19, 0
    %p89 = por %p87, %p88
    %p90 = scmp.ne.s32.totalorder %s78, %s79
    %p91 = scmp.eq.s32.totalorder %s20, 1
    %p92 = por %p90, %p91
    %p94 = scmp.ne.s32.totalorder %s79, %s93
    %p95 = scmp.eq.s32.totalorder %s20, 0
    %p96 = por %p94, %p95
    %s98 = sadd.s32 %s97, 1
    %p101 = scmp.eq.s32.totalorder %s14, 1
    %p102 = scmp.ne.s32.totalorder %s97, %s99
    %p103 = scmp.eq.s32.totalorder %s14, 0
    %p104 = por %p102, %p103
    %p105 = scmp.ne.s32.totalorder %s97, %s99
    %p106 = scmp.eq.s32.totalorder %s19, 1
    %p107 = por %p105, %p106
    %p108 = scmp.ne.s32.totalorder %s99, %s100
    %p109 = scmp.eq.s32.totalorder %s19, 0
    %p110 = por %p108, %p109
    %p111 = scmp.ne.s32.totalorder %s99, %s100
    %p112 = scmp.eq.s32.totalorder %s20, 1
    %p113 = por %p111, %p112
    %p115 = scmp.ne.s32.totalorder %s100, %s114
    %p116 = scmp.eq.s32.totalorder %s20, 0
    %p117 = por %p115, %p116
    %s118 = ssub.s32 %s21, %s33
    %s119 = ssub.s32 %s22, %s29
    %s120 = sor.u32 %s118, %s119
    %p121 = scmp.eq.s32.totalorder %s120, 0
    %s123 = sadd.s32 %s122, 1
    %s124 = scalar_select %p121, %s122, %s123
    %p127 = pneg %p121
    %p128 = scmp.eq.s32.totalorder %s14, 1
    %p129 = por %p127, %p128
    %p130 = scmp.ne.s32.totalorder %s122, %s125
    %p131 = scmp.eq.s32.totalorder %s14, 0
    %p132 = por %p130, %p131
    %p133 = scmp.ne.s32.totalorder %s122, %s125
    %p134 = scmp.eq.s32.totalorder %s19, 1
    %p135 = por %p133, %p134
    %p136 = scmp.ne.s32.totalorder %s125, %s126
    %p137 = scmp.eq.s32.totalorder %s19, 0
    %p138 = por %p136, %p137
    %p139 = scmp.ne.s32.totalorder %s125, %s126
    %p140 = scmp.eq.s32.totalorder %s20, 1
    %p141 = por %p139, %p140
    %p143 = scmp.ne.s32.totalorder %s126, %s142
    %p144 = scmp.eq.s32.totalorder %s20, 0
    %p145 = por %p143, %p144
    %s146 = ssub.s32 %s21, %s33
    %s147 = ssub.s32 %s22, %s29
    %s148 = sor.u32 %s146, %s147
    %p149 = scmp.eq.s32.totalorder %s148, 0
    %s151 = sadd.s32 %s150, 1
    %s152 = scalar_select %p149, %s150, %s151
    %p155 = pneg %p149
    %p156 = scmp.eq.s32.totalorder %s14, 1
    %p157 = por %p155, %p156
    %p158 = scmp.ne.s32.totalorder %s150, %s153
    %p159 = scmp.eq.s32.totalorder %s14, 0
    %p160 = por %p158, %p159
    %p161 = scmp.ne.s32.totalorder %s150, %s153
    %p162 = scmp.eq.s32.totalorder %s19, 1
    %p163 = por %p161, %p162
    %p164 = scmp.ne.s32.totalorder %s153, %s154
    %p165 = scmp.eq.s32.totalorder %s19, 0
    %p166 = por %p164, %p165
    %p167 = scmp.ne.s32.totalorder %s153, %s154
    %p168 = scmp.eq.s32.totalorder %s20, 1
    %p169 = por %p167, %p168
    %p171 = scmp.ne.s32.totalorder %s154, %s170
    %p172 = scmp.eq.s32.totalorder %s20, 0
    %p173 = por %p171, %p172
    %s175 = sadd.s32 %s174, 1
    %p178 = scmp.eq.s32.totalorder %s14, 1
    %p179 = scmp.ne.s32.totalorder %s174, %s176
    %p180 = scmp.eq.s32.totalorder %s14, 0
    %p181 = por %p179, %p180
    %p182 = scmp.ne.s32.totalorder %s174, %s176
    %p183 = scmp.eq.s32.totalorder %s19, 1
    %p184 = por %p182, %p183
    %p185 = scmp.ne.s32.totalorder %s176, %s177
    %p186 = scmp.eq.s32.totalorder %s19, 0
    %p187 = por %p185, %p186
    %p188 = scmp.ne.s32.totalorder %s176, %s177
    %p189 = scmp.eq.s32.totalorder %s20, 1
    %p190 = por %p188, %p189
    %p192 = scmp.ne.s32.totalorder %s177, %s191
    %p193 = scmp.eq.s32.totalorder %s20, 0
    %p194 = por %p192, %p193
    %s196 = sadd.s32 %s195, 1
    %p199 = scmp.eq.s32.totalorder %s14, 1
    %p200 = scmp.ne.s32.totalorder %s195, %s197
    %p201 = scmp.eq.s32.totalorder %s14, 0
    %p202 = por %p200, %p201
    %p203 = scmp.ne.s32.totalorder %s195, %s197
    %p204 = scmp.eq.s32.totalorder %s19, 1
    %p205 = por %p203, %p204
    %p206 = scmp.ne.s32.totalorder %s197, %s198
    %p207 = scmp.eq.s32.totalorder %s19, 0
    %p208 = por %p206, %p207
    %p209 = scmp.ne.s32.totalorder %s197, %s198
    %p210 = scmp.eq.s32.totalorder %s20, 1
    %p211 = por %p209, %p210
    %p213 = scmp.ne.s32.totalorder %s198, %s212
    %p214 = scmp.eq.s32.totalorder %s20, 0
    %p215 = por %p213, %p214
    %p216 = scmp.le.s32.totalorder 1, %s14
    %p217 = scmp.lt.s32.totalorder %s14, 3
    %p218 = pnand %p216, %p217
    %p219 = pneg %p218
    // Predicated region
    $region9: #{weightnet_forward.5} parent=5 // pred_check
      _
    $region10: #{weightnet_forward.5} parent=5 // pred_check_branch
      %221 = sbr.rel (%p218) target = $region12
    $region11: #{weightnet_forward.5} parent=5 // pred_region
      %s222 = ssub.s32 %s14, 1
      // Predicated region
      $region13: #{weightnet_forward.5} parent=11 // pred_check
        %p223 = pneg %p47
      $region14: #{weightnet_forward.5} parent=11 // pred_check_branch
        %225 = sbr.rel (%p223) target = $region16
      $region15: #{weightnet_forward.5} parent=11 // pred_region
        _
      $region16: #{weightnet_forward.5} parent=11 // pred_fallthru
        _
      // Predicated region
      $region17: #{weightnet_forward.5} parent=11 // pred_check
        %p226 = pneg %p68
      $region18: #{weightnet_forward.5} parent=11 // pred_check_branch
        %228 = sbr.rel (%p226) target = $region20
      $region19: #{weightnet_forward.5} parent=11 // pred_region
        _
      $region20: #{weightnet_forward.5} parent=11 // pred_fallthru
        _
      // Predicated region
      $region21: #{weightnet_forward.5} parent=11 // pred_check
        %p229 = pneg %p89
      $region22: #{weightnet_forward.5} parent=11 // pred_check_branch
        %231 = sbr.rel (%p229) target = $region24
      $region23: #{weightnet_forward.5} parent=11 // pred_region
        _
      $region24: #{weightnet_forward.5} parent=11 // pred_fallthru
        _
      // Predicated region
      $region25: #{weightnet_forward.5} parent=11 // pred_check
        %p232 = pneg %p110
      $region26: #{weightnet_forward.5} parent=11 // pred_check_branch
        %234 = sbr.rel (%p232) target = $region28
      $region27: #{weightnet_forward.5} parent=11 // pred_region
        _
      $region28: #{weightnet_forward.5} parent=11 // pred_fallthru
        _
    $region12: #{weightnet_forward.5} parent=5 // pred_fallthru
      _
    %p235 = scmp.lt.s32.totalorder %s14, 2
    // Predicated region
    $region29: #{weightnet_forward.5} parent=5 // pred_check
      %p236 = pneg %p235
    $region30: #{weightnet_forward.5} parent=5 // pred_check_branch
      %238 = sbr.rel (%p236) target = $region32
    $region31: #{weightnet_forward.5} parent=5 // pred_region
      // Predicated region
      $region33: #{weightnet_forward.5} parent=31 // pred_check
        %p239 = pneg %p132
      $region34: #{weightnet_forward.5} parent=31 // pred_check_branch
        %241 = sbr.rel (%p239) target = $region36
      $region35: #{weightnet_forward.5} parent=31 // pred_region
        %p242 = scmp.lt.s32.totalorder %s21, 1
        %s243 = scalar_select %p242, %s21, 1
        %p244 = scmp.lt.s32.totalorder %s22, 0
        %s245 = scalar_select %p244, %s22, 0
        %s246 = sadd.s32 %s245, %s243
        %s247 = smul.addr %s246, 4
        %s248 = scalar_lea.vmem %s4, %s247
      $region36: #{weightnet_forward.5} parent=31 // pred_fallthru
        _
    $region32: #{weightnet_forward.5} parent=5 // pred_fallthru
      _
    %p249 = scmp.le.s32.totalorder 1, %s14
    %p250 = scmp.lt.s32.totalorder %s14, 3
    %p251 = pnand %p249, %p250
    %p252 = pneg %p251
    // Predicated region
    $region37: #{weightnet_forward.5} parent=5 // pred_check
      _
    $region38: #{weightnet_forward.5} parent=5 // pred_check_branch
      %254 = sbr.rel (%p251) target = $region40
    $region39: #{weightnet_forward.5} parent=5 // pred_region
      %s255 = ssub.s32 %s14, 1
      %p256 = pneg %p47
      %p257 = pneg %p44
      %p258 = pneg %p68
      %p259 = pneg %p65
      %p260 = pneg %p89
      %p261 = pneg %p86
      %p262 = pneg %p110
      %p263 = pneg %p107
      %p264 = scmp.lt.s32.totalorder %s23, 1
      %s265 = scalar_select %p264, %s23, 1
      %p266 = scmp.lt.s32.totalorder %s24, 0
      %s267 = scalar_select %p266, %s24, 0
      %s268 = sadd.s32 %s267, %s265
      %s269 = smul.addr %s268, 4
      %s270 = scalar_lea.vmem %s4, %s269
      %p271 = pneg %p138
      %p272 = pneg %p135
      %p273 = pneg %p166
      %p274 = pneg %p163
      %p275 = scmp.lt.s32.totalorder %s23, 1
      %s276 = scalar_select %p275, %s23, 1
      %p277 = scmp.lt.s32.totalorder %s24, 0
      %s278 = scalar_select %p277, %s24, 0
      %s279 = sadd.s32 %s278, %s276
      %s280 = smul.addr %s279, 8
      %s281 = scalar_lea.vmem %s5, %s280
      %p282 = pneg %p187
      %p283 = pneg %p184
      %p284 = pneg %p208
      %p285 = pneg %p205
      %p286 = scmp.lt.s32.totalorder %s23, 1
      %s287 = scalar_select %p286, %s23, 1
      %p288 = scmp.lt.s32.totalorder %s24, 0
      %s289 = scalar_select %p288, %s24, 0
      %s290 = sadd.s32 %s289, %s287
      %s291 = smul.addr %s290, 4
      %s292 = scalar_lea.vmem %s4, %s291
      %p293 = scmp.lt.s32.totalorder %s23, 1
      %s294 = scalar_select %p293, %s23, 1
      %p295 = scmp.lt.s32.totalorder %s24, 0
      %s296 = scalar_select %p295, %s24, 0
      %s297 = sadd.s32 %s296, %s294
      %s298 = smul.addr %s297, 8
      %s299 = scalar_lea.vmem %s5, %s298
      %v300 = vld [vmem:[%s0] sm:$0xff]
      %v301 = vld [vmem:[%s292] sm:$0x7]
      %vm302 = vcmask 23552
      %v304 = vsel %vm302, %v300, 0
      %vm306 = vcmask 1042432
      %v308 = vsel %vm306, %v301, 0
      %310 = vmatpush.msra.mxu0 0.0
      %311 = vmatpush.msra.mxu0 0.0
      %312 = vmatpush.msra.mxu0 0.0
      %313 = vmatpush.msra.mxu0 0.0
      %314 = vmatpush.msra.mxu0 0.0
      %315 = vmatpush.msra.mxu0 0.0
      %316 = vmatpush.msra.mxu0 0.0
      %317 = vmatpush.msra.mxu0 0.0
      %318 = vmatpush.msra.mxu0 0.0
      %319 = vmatpush.msra.mxu0 0.0
      %320 = vmatpush.msra.mxu0 0.0
      %321 = vmatpush.msra.mxu0 0.0
      %322 = vmatpush.msra.mxu0 0.0
      %323 = vmatpush.msra.mxu0 0.0
      %324 = vmatpush.msra.mxu0 0.0
      %325 = vmatpush.msra.mxu0 %v308
      %326 = vmatmul.f32.gmra.mxu0 %v304
      %v327 = vpop.f32.mrf.mxu0
      %v328 = vadd.f32 0.0, %v327
      %329 = vdwg.mxu0
      %v330 = vld [vmem:[%s1] sm:$0xff]
      %332 = vset.pattern.permute.xlu0 0
      %333 = vperm.xlu0 %332, %v330
      %v334 = vpop.permute.xlu0 %333
      %v336 = vmul.f32 %v328, %v334
      %v337 = vld [vmem:[%s2] sm:$0xff]
      %339 = vset.pattern.permute.xlu0 0
      %340 = vperm.xlu0 %339, %v337
      %v341 = vpop.permute.xlu0 %340
      %v343 = vadd.f32 %v336, %v341
      %v344 = vmax.f32 %v343, 0.0
      %345 = vst [vmem:[%s299] sm:$0xff] %v344
      %v346 = vld [vmem:[%s3] sm:$0xff]
      %vm347 = vcmask 64512
      %v349 = vsel %vm347, %v346, 0
      %351 = vmatpush.msra.mxu0 0.0
      %352 = vmatpush.msra.mxu0 0.0
      %353 = vmatpush.msra.mxu0 0.0
      %354 = vmatpush.msra.mxu0 0.0
      %355 = vmatpush.msra.mxu0 0.0
      %356 = vmatpush.msra.mxu0 0.0
      %357 = vmatpush.msra.mxu0 0.0
      %358 = vmatpush.msra.mxu0 0.0
      %359 = vmatpush.msra.mxu0 0.0
      %360 = vmatpush.msra.mxu0 0.0
      %361 = vmatpush.msra.mxu0 0.0
      %362 = vmatpush.msra.mxu0 0.0
      %363 = vmatpush.msra.mxu0 0.0
      %364 = vmatpush.msra.mxu0 0.0
      %365 = vmatpush.msra.mxu0 0.0
      %366 = vmatpush.msra.mxu0 %v344
      %367 = vmatmul.f32.gmra.mxu0 %v349
      %v368 = vpop.f32.mrf.mxu0
      %v369 = vadd.f32 0.0, %v368
      %370 = vdwg.mxu0
      %v371 = vlaneseq
      %v372 = vand.u32 %v371, 127
      %s373 = smul.u32 %s24, 128
      %s374 = ssub.s32 128, %s373
      %p375 = scmp.lt.s32.totalorder %s374, 128
      %s376 = scalar_select %p375, %s374, 128
      %v377 = vstv %s376
      %vm378 = vcmp.lt.s32.totalorder %v372, %v377
      %p379 = scmp.eq.s32.totalorder %s23, 0
      %p380 = scmp.eq.s32.totalorder %s24, 0
      %p381 = pnand %p379, %p380
      %p382 = pneg %p381
      // Predicated region
      $region41: #{weightnet_forward.5} parent=39 // pred_check
        _
      $region42: #{weightnet_forward.5} parent=39 // pred_check_branch
        %384 = sbr.rel (%p381) target = $region44
      $region43: #{weightnet_forward.5} parent=39 // pred_region
        %vm385 = vcmask 7168
        %386 = vst.msk [vmem:[%s6] sm:$0xff] %vm385, 0.0
        %387 = vst.msk [vmem:[%s7] sm:$0xff] %vm385, 0.0
      $region44: #{weightnet_forward.5} parent=39 // pred_fallthru
        _
      %v388 = vsel %vm378, 1, 0
      %vm389 = vcmp.eq.s32.totalorder %v388, 1
      %v390 = vsel %vm389, %v369, 0.0
      %v391 = vld [vmem:[%s6] sm:$0xff]
      %392 = vadd.xlane.f32.xlu0 %v390
      %v393 = vpop.xlane.xlu0 %392
      %v394 = vadd.f32 %v391, %v393
      %vm395 = vcmask 7168
      %396 = vst.msk [vmem:[%s6] sm:$0xff] %vm395, %v394
      %v397 = vld [vmem:[%s7] sm:$0xff]
      %v398 = vmul.f32 %v390, %v390
      %399 = vadd.xlane.f32.xlu0 %v398
      %v400 = vpop.xlane.xlu0 %399
      %v401 = vadd.f32 %v397, %v400
      %402 = vst.msk [vmem:[%s7] sm:$0xff] %vm395, %v401
      %p403 = scmp.lt.s32.totalorder %s23, 1
      %s404 = scalar_select %p403, %s23, 1
      %p405 = scmp.lt.s32.totalorder %s24, 0
      %s406 = scalar_select %p405, %s24, 0
      %s407 = sadd.s32 %s406, %s404
      %s408 = smul.addr %s407, 8
      %s409 = scalar_lea.vmem %s5, %s408
      // Predicated region
      $region45: #{weightnet_forward.5} parent=39 // pred_check
        %p410 = pneg %p163
      $region46: #{weightnet_forward.5} parent=39 // pred_check_branch
        %412 = sbr.rel (%p410) target = $region48
      $region47: #{weightnet_forward.5} parent=39 // pred_region
        _
      $region48: #{weightnet_forward.5} parent=39 // pred_fallthru
        _
      // Predicated region
      $region49: #{weightnet_forward.5} parent=39 // pred_check
        %p413 = pneg %p184
      $region50: #{weightnet_forward.5} parent=39 // pred_check_branch
        %415 = sbr.rel (%p413) target = $region52
      $region51: #{weightnet_forward.5} parent=39 // pred_region
        _
      $region52: #{weightnet_forward.5} parent=39 // pred_fallthru
        _
      // Predicated region
      $region53: #{weightnet_forward.5} parent=39 // pred_check
        %p416 = pneg %p205
      $region54: #{weightnet_forward.5} parent=39 // pred_check_branch
        %418 = sbr.rel (%p416) target = $region56
      $region55: #{weightnet_forward.5} parent=39 // pred_region
        _
      $region56: #{weightnet_forward.5} parent=39 // pred_fallthru
        _
      // Predicated region
      $region57: #{weightnet_forward.5} parent=39 // pred_check
        %p419 = pneg %p184
      $region58: #{weightnet_forward.5} parent=39 // pred_check_branch
        %421 = sbr.rel (%p419) target = $region60
      $region59: #{weightnet_forward.5} parent=39 // pred_region
        _
      $region60: #{weightnet_forward.5} parent=39 // pred_fallthru
        _
      // Predicated region
      $region61: #{weightnet_forward.5} parent=39 // pred_check
        %p422 = pneg %p205
      $region62: #{weightnet_forward.5} parent=39 // pred_check_branch
        %424 = sbr.rel (%p422) target = $region64
      $region63: #{weightnet_forward.5} parent=39 // pred_region
        _
      $region64: #{weightnet_forward.5} parent=39 // pred_fallthru
        _
    $region40: #{weightnet_forward.5} parent=5 // pred_fallthru
      _
    %p425 = scmp.le.s32.totalorder 2, %s14
    // Predicated region
    $region65: #{weightnet_forward.5} parent=5 // pred_check
      %p426 = pneg %p425
    $region66: #{weightnet_forward.5} parent=5 // pred_check_branch
      %428 = sbr.rel (%p426) target = $region68
    $region67: #{weightnet_forward.5} parent=5 // pred_region
      %s429 = ssub.s32 %s14, 2
      // Predicated region
      $region69: #{weightnet_forward.5} parent=67 // pred_check
        %p430 = pneg %p169
      $region70: #{weightnet_forward.5} parent=67 // pred_check_branch
        %432 = sbr.rel (%p430) target = $region72
      $region71: #{weightnet_forward.5} parent=67 // pred_region
        %p433 = scmp.lt.s32.totalorder %s25, 1
        %s434 = scalar_select %p433, %s25, 1
        %p435 = scmp.lt.s32.totalorder %s26, 0
        %s436 = scalar_select %p435, %s26, 0
        %s437 = sadd.s32 %s436, %s434
        %s438 = smul.addr %s437, 8
        %s439 = scalar_lea.vmem %s5, %s438
      $region72: #{weightnet_forward.5} parent=67 // pred_fallthru
        _
    $region68: #{weightnet_forward.5} parent=5 // pred_fallthru
      _
  $region6: #{weightnet_forward.5} parent=0 // loop_footer
    %s18 = sadd.s32 1, %s14
  $region7: #{weightnet_forward.5} parent=0 // loop_footer_branch
    %13 = sbr.rel target = $region3
  $region8: #{weightnet_forward.5} parent=0 // loop_exit
    _

// kernel: weightnet_forward.6
$region0: #{weightnet_forward.6}
  #allocation0 [shape = 'u32[]', space=smem, size = 0x4, offset = 0x4, fixed_abs, tag = 'smem constant byte address 0x4 - core index']
  #allocation1 [shape = 'u32[72,128]{1,0:T(1,128)}', space=vmem, size = 0x9000, scoped, tag = 'internal scratch']
  %s0 = inlined_call_operand.vmem [shape: f32[8,8], index: 0, kind: input, shape index: {}]
  %s1 = inlined_call_operand.vmem [shape: f32[8,1], index: 1, kind: input, shape index: {}]
  %s2 = inlined_call_operand.vmem [shape: f32[8,1], index: 2, kind: input, shape index: {}]
  %s3 = inlined_call_operand.vmem [shape: f32[16,8], index: 3, kind: input, shape index: {}]
  %s4 = inlined_call_operand.vmem [shape: f32[2,8,128], index: 4, kind: input, shape index: {}]
  %s5 = inlined_call_operand.vmem [shape: f32[2,8,128], index: 5, kind: output, shape index: {0}]
  %s6 = inlined_call_operand.vmem [shape: f32[16,1], index: 6, kind: output, shape index: {1}]
  %s7 = inlined_call_operand.vmem [shape: f32[16,1], index: 7, kind: output, shape index: {2}]
  %8 = xla_tuple %s5, %s6, %s7
  %s9 = sld [smem:[#allocation0]]
  $region73: #{weightnet_forward.6} parent=0
    _
  %s11 = ssub.s32 1, %s9
  %s12 = scalar_select 0, %s11, %s9
  loop: start=0, step=1, limit=4
  $region2: #{weightnet_forward.6} parent=0 // loop_pre_header
    _
  $region3: #{weightnet_forward.6} parent=0 // loop_header
    %s14 = sphi 0, %s18
    %p15 = scmp.ge.s32.totalorder %s14, 4
    %s21 = sphi 0, %s33
    %s22 = sphi 0, %s29
    %s23 = sphi 0, %s21
    %s24 = sphi 0, %s22
    %s25 = sphi 0, %s23
    %s26 = sphi 0, %s24
    %s34 = sphi 0, %s34
    %s36 = sphi 0, %s34
    %s37 = sphi 0, %s36
    %s51 = sphi 0, %s37
    %s55 = sphi 0, %s55
    %s57 = sphi 0, %s55
    %s58 = sphi 0, %s57
    %s72 = sphi 0, %s58
    %s76 = sphi 0, %s76
    %s78 = sphi 0, %s76
    %s79 = sphi 0, %s78
    %s93 = sphi 0, %s79
    %s97 = sphi 0, %s97
    %s99 = sphi 0, %s97
    %s100 = sphi 0, %s99
    %s114 = sphi 0, %s100
    %s122 = sphi 0, %s124
    %s125 = sphi 0, %s122
    %s126 = sphi 0, %s125
    %s142 = sphi 0, %s126
    %s150 = sphi 0, %s152
    %s153 = sphi 0, %s150
    %s154 = sphi 0, %s153
    %s170 = sphi 0, %s154
    %s174 = sphi 0, %s174
    %s176 = sphi 0, %s174
    %s177 = sphi 0, %s176
    %s191 = sphi 0, %s177
    %s195 = sphi 0, %s195
    %s197 = sphi 0, %s195
    %s198 = sphi 0, %s197
    %s212 = sphi 0, %s198
  $region4: #{weightnet_forward.6} parent=0 // loop_header_branch
    %17 = sbr.rel (%p15) target = $region8
  $region5: #{weightnet_forward.6} parent=0 // loop_body
    %s19 = ssub.s32 %s14, 1
    %s20 = ssub.s32 %s14, 2
    %s27 = sadd.s32 1, %s22
    %p28 = scmp.ge.s32.totalorder %s27, 1
    %s29 = scalar_select %p28, 0, %s27
    %s30 = sadd.s32 1, %s21
    %s31 = scalar_select %p28, %s30, %s21
    %p32 = scmp.ge.s32.totalorder %s31, 2
    %s33 = scalar_select %p32, 0, %s31
    %s35 = sadd.s32 %s34, 1
    %p38 = scmp.eq.s32.totalorder %s14, 1
    %p39 = scmp.ne.s32.totalorder %s34, %s36
    %p40 = scmp.eq.s32.totalorder %s14, 0
    %p41 = por %p39, %p40
    %p42 = scmp.ne.s32.totalorder %s34, %s36
    %p43 = scmp.eq.s32.totalorder %s19, 1
    %p44 = por %p42, %p43
    %p45 = scmp.ne.s32.totalorder %s36, %s37
    %p46 = scmp.eq.s32.totalorder %s19, 0
    %p47 = por %p45, %p46
    %p48 = scmp.ne.s32.totalorder %s36, %s37
    %p49 = scmp.eq.s32.totalorder %s20, 1
    %p50 = por %p48, %p49
    %p52 = scmp.ne.s32.totalorder %s37, %s51
    %p53 = scmp.eq.s32.totalorder %s20, 0
    %p54 = por %p52, %p53
    %s56 = sadd.s32 %s55, 1
    %p59 = scmp.eq.s32.totalorder %s14, 1
    %p60 = scmp.ne.s32.totalorder %s55, %s57
    %p61 = scmp.eq.s32.totalorder %s14, 0
    %p62 = por %p60, %p61
    %p63 = scmp.ne.s32.totalorder %s55, %s57
    %p64 = scmp.eq.s32.totalorder %s19, 1
    %p65 = por %p63, %p64
    %p66 = scmp.ne.s32.totalorder %s57, %s58
    %p67 = scmp.eq.s32.totalorder %s19, 0
    %p68 = por %p66, %p67
    %p69 = scmp.ne.s32.totalorder %s57, %s58
    %p70 = scmp.eq.s32.totalorder %s20, 1
    %p71 = por %p69, %p70
    %p73 = scmp.ne.s32.totalorder %s58, %s72
    %p74 = scmp.eq.s32.totalorder %s20, 0
    %p75 = por %p73, %p74
    %s77 = sadd.s32 %s76, 1
    %p80 = scmp.eq.s32.totalorder %s14, 1
    %p81 = scmp.ne.s32.totalorder %s76, %s78
    %p82 = scmp.eq.s32.totalorder %s14, 0
    %p83 = por %p81, %p82
    %p84 = scmp.ne.s32.totalorder %s76, %s78
    %p85 = scmp.eq.s32.totalorder %s19, 1
    %p86 = por %p84, %p85
    %p87 = scmp.ne.s32.totalorder %s78, %s79
    %p88 = scmp.eq.s32.totalorder %s19, 0
    %p89 = por %p87, %p88
    %p90 = scmp.ne.s32.totalorder %s78, %s79
    %p91 = scmp.eq.s32.totalorder %s20, 1
    %p92 = por %p90, %p91
    %p94 = scmp.ne.s32.totalorder %s79, %s93
    %p95 = scmp.eq.s32.totalorder %s20, 0
    %p96 = por %p94, %p95
    %s98 = sadd.s32 %s97, 1
    %p101 = scmp.eq.s32.totalorder %s14, 1
    %p102 = scmp.ne.s32.totalorder %s97, %s99
    %p103 = scmp.eq.s32.totalorder %s14, 0
    %p104 = por %p102, %p103
    %p105 = scmp.ne.s32.totalorder %s97, %s99
    %p106 = scmp.eq.s32.totalorder %s19, 1
    %p107 = por %p105, %p106
    %p108 = scmp.ne.s32.totalorder %s99, %s100
    %p109 = scmp.eq.s32.totalorder %s19, 0
    %p110 = por %p108, %p109
    %p111 = scmp.ne.s32.totalorder %s99, %s100
    %p112 = scmp.eq.s32.totalorder %s20, 1
    %p113 = por %p111, %p112
    %p115 = scmp.ne.s32.totalorder %s100, %s114
    %p116 = scmp.eq.s32.totalorder %s20, 0
    %p117 = por %p115, %p116
    %s118 = ssub.s32 %s21, %s33
    %s119 = ssub.s32 %s22, %s29
    %s120 = sor.u32 %s118, %s119
    %p121 = scmp.eq.s32.totalorder %s120, 0
    %s123 = sadd.s32 %s122, 1
    %s124 = scalar_select %p121, %s122, %s123
    %p127 = pneg %p121
    %p128 = scmp.eq.s32.totalorder %s14, 1
    %p129 = por %p127, %p128
    %p130 = scmp.ne.s32.totalorder %s122, %s125
    %p131 = scmp.eq.s32.totalorder %s14, 0
    %p132 = por %p130, %p131
    %p133 = scmp.ne.s32.totalorder %s122, %s125
    %p134 = scmp.eq.s32.totalorder %s19, 1
    %p135 = por %p133, %p134
    %p136 = scmp.ne.s32.totalorder %s125, %s126
    %p137 = scmp.eq.s32.totalorder %s19, 0
    %p138 = por %p136, %p137
    %p139 = scmp.ne.s32.totalorder %s125, %s126
    %p140 = scmp.eq.s32.totalorder %s20, 1
    %p141 = por %p139, %p140
    %p143 = scmp.ne.s32.totalorder %s126, %s142
    %p144 = scmp.eq.s32.totalorder %s20, 0
    %p145 = por %p143, %p144
    %s146 = ssub.s32 %s21, %s33
    %s147 = ssub.s32 %s22, %s29
    %s148 = sor.u32 %s146, %s147
    %p149 = scmp.eq.s32.totalorder %s148, 0
    %s151 = sadd.s32 %s150, 1
    %s152 = scalar_select %p149, %s150, %s151
    %p155 = pneg %p149
    %p156 = scmp.eq.s32.totalorder %s14, 1
    %p157 = por %p155, %p156
    %p158 = scmp.ne.s32.totalorder %s150, %s153
    %p159 = scmp.eq.s32.totalorder %s14, 0
    %p160 = por %p158, %p159
    %p161 = scmp.ne.s32.totalorder %s150, %s153
    %p162 = scmp.eq.s32.totalorder %s19, 1
    %p163 = por %p161, %p162
    %p164 = scmp.ne.s32.totalorder %s153, %s154
    %p165 = scmp.eq.s32.totalorder %s19, 0
    %p166 = por %p164, %p165
    %p167 = scmp.ne.s32.totalorder %s153, %s154
    %p168 = scmp.eq.s32.totalorder %s20, 1
    %p169 = por %p167, %p168
    %p171 = scmp.ne.s32.totalorder %s154, %s170
    %p172 = scmp.eq.s32.totalorder %s20, 0
    %p173 = por %p171, %p172
    %s175 = sadd.s32 %s174, 1
    %p178 = scmp.eq.s32.totalorder %s14, 1
    %p179 = scmp.ne.s32.totalorder %s174, %s176
    %p180 = scmp.eq.s32.totalorder %s14, 0
    %p181 = por %p179, %p180
    %p182 = scmp.ne.s32.totalorder %s174, %s176
    %p183 = scmp.eq.s32.totalorder %s19, 1
    %p184 = por %p182, %p183
    %p185 = scmp.ne.s32.totalorder %s176, %s177
    %p186 = scmp.eq.s32.totalorder %s19, 0
    %p187 = por %p185, %p186
    %p188 = scmp.ne.s32.totalorder %s176, %s177
    %p189 = scmp.eq.s32.totalorder %s20, 1
    %p190 = por %p188, %p189
    %p192 = scmp.ne.s32.totalorder %s177, %s191
    %p193 = scmp.eq.s32.totalorder %s20, 0
    %p194 = por %p192, %p193
    %s196 = sadd.s32 %s195, 1
    %p199 = scmp.eq.s32.totalorder %s14, 1
    %p200 = scmp.ne.s32.totalorder %s195, %s197
    %p201 = scmp.eq.s32.totalorder %s14, 0
    %p202 = por %p200, %p201
    %p203 = scmp.ne.s32.totalorder %s195, %s197
    %p204 = scmp.eq.s32.totalorder %s19, 1
    %p205 = por %p203, %p204
    %p206 = scmp.ne.s32.totalorder %s197, %s198
    %p207 = scmp.eq.s32.totalorder %s19, 0
    %p208 = por %p206, %p207
    %p209 = scmp.ne.s32.totalorder %s197, %s198
    %p210 = scmp.eq.s32.totalorder %s20, 1
    %p211 = por %p209, %p210
    %p213 = scmp.ne.s32.totalorder %s198, %s212
    %p214 = scmp.eq.s32.totalorder %s20, 0
    %p215 = por %p213, %p214
    %p216 = scmp.le.s32.totalorder 1, %s14
    %p217 = scmp.lt.s32.totalorder %s14, 3
    %p218 = pnand %p216, %p217
    %p219 = pneg %p218
    // Predicated region
    $region9: #{weightnet_forward.6} parent=5 // pred_check
      _
    $region10: #{weightnet_forward.6} parent=5 // pred_check_branch
      %221 = sbr.rel (%p218) target = $region12
    $region11: #{weightnet_forward.6} parent=5 // pred_region
      %s222 = ssub.s32 %s14, 1
      // Predicated region
      $region13: #{weightnet_forward.6} parent=11 // pred_check
        %p223 = pneg %p47
      $region14: #{weightnet_forward.6} parent=11 // pred_check_branch
        %225 = sbr.rel (%p223) target = $region16
      $region15: #{weightnet_forward.6} parent=11 // pred_region
        _
      $region16: #{weightnet_forward.6} parent=11 // pred_fallthru
        _
      // Predicated region
      $region17: #{weightnet_forward.6} parent=11 // pred_check
        %p226 = pneg %p68
      $region18: #{weightnet_forward.6} parent=11 // pred_check_branch
        %228 = sbr.rel (%p226) target = $region20
      $region19: #{weightnet_forward.6} parent=11 // pred_region
        _
      $region20: #{weightnet_forward.6} parent=11 // pred_fallthru
        _
      // Predicated region
      $region21: #{weightnet_forward.6} parent=11 // pred_check
        %p229 = pneg %p89
      $region22: #{weightnet_forward.6} parent=11 // pred_check_branch
        %231 = sbr.rel (%p229) target = $region24
      $region23: #{weightnet_forward.6} parent=11 // pred_region
        _
      $region24: #{weightnet_forward.6} parent=11 // pred_fallthru
        _
      // Predicated region
      $region25: #{weightnet_forward.6} parent=11 // pred_check
        %p232 = pneg %p110
      $region26: #{weightnet_forward.6} parent=11 // pred_check_branch
        %234 = sbr.rel (%p232) target = $region28
      $region27: #{weightnet_forward.6} parent=11 // pred_region
        _
      $region28: #{weightnet_forward.6} parent=11 // pred_fallthru
        _
    $region12: #{weightnet_forward.6} parent=5 // pred_fallthru
      _
    %p235 = scmp.lt.s32.totalorder %s14, 2
    // Predicated region
    $region29: #{weightnet_forward.6} parent=5 // pred_check
      %p236 = pneg %p235
    $region30: #{weightnet_forward.6} parent=5 // pred_check_branch
      %238 = sbr.rel (%p236) target = $region32
    $region31: #{weightnet_forward.6} parent=5 // pred_region
      // Predicated region
      $region33: #{weightnet_forward.6} parent=31 // pred_check
        %p239 = pneg %p132
      $region34: #{weightnet_forward.6} parent=31 // pred_check_branch
        %241 = sbr.rel (%p239) target = $region36
      $region35: #{weightnet_forward.6} parent=31 // pred_region
        %p242 = scmp.lt.s32.totalorder %s21, 1
        %s243 = scalar_select %p242, %s21, 1
        %p244 = scmp.lt.s32.totalorder %s22, 0
        %s245 = scalar_select %p244, %s22, 0
        %s246 = sadd.s32 %s245, %s243
        %s247 = smul.addr %s246, 8
        %s248 = scalar_lea.vmem %s4, %s247
      $region36: #{weightnet_forward.6} parent=31 // pred_fallthru
        _
    $region32: #{weightnet_forward.6} parent=5 // pred_fallthru
      _
    %p249 = scmp.le.s32.totalorder 1, %s14
    %p250 = scmp.lt.s32.totalorder %s14, 3
    %p251 = pnand %p249, %p250
    %p252 = pneg %p251
    // Predicated region
    $region37: #{weightnet_forward.6} parent=5 // pred_check
      _
    $region38: #{weightnet_forward.6} parent=5 // pred_check_branch
      %254 = sbr.rel (%p251) target = $region40
    $region39: #{weightnet_forward.6} parent=5 // pred_region
      %s255 = ssub.s32 %s14, 1
      %p256 = pneg %p47
      %p257 = pneg %p44
      %p258 = pneg %p68
      %p259 = pneg %p65
      %p260 = pneg %p89
      %p261 = pneg %p86
      %p262 = pneg %p110
      %p263 = pneg %p107
      %p264 = scmp.lt.s32.totalorder %s23, 1
      %s265 = scalar_select %p264, %s23, 1
      %p266 = scmp.lt.s32.totalorder %s24, 0
      %s267 = scalar_select %p266, %s24, 0
      %s268 = sadd.s32 %s267, %s265
      %s269 = smul.addr %s268, 8
      %s270 = scalar_lea.vmem %s4, %s269
      %p271 = pneg %p138
      %p272 = pneg %p135
      %p273 = pneg %p166
      %p274 = pneg %p163
      %p275 = scmp.lt.s32.totalorder %s23, 1
      %s276 = scalar_select %p275, %s23, 1
      %p277 = scmp.lt.s32.totalorder %s24, 0
      %s278 = scalar_select %p277, %s24, 0
      %s279 = sadd.s32 %s278, %s276
      %s280 = smul.addr %s279, 8
      %s281 = scalar_lea.vmem %s5, %s280
      %p282 = pneg %p187
      %p283 = pneg %p184
      %p284 = pneg %p208
      %p285 = pneg %p205
      %p286 = scmp.lt.s32.totalorder %s23, 1
      %s287 = scalar_select %p286, %s23, 1
      %p288 = scmp.lt.s32.totalorder %s24, 0
      %s289 = scalar_select %p288, %s24, 0
      %s290 = sadd.s32 %s289, %s287
      %s291 = smul.addr %s290, 8
      %s292 = scalar_lea.vmem %s4, %s291
      %p293 = scmp.lt.s32.totalorder %s23, 1
      %s294 = scalar_select %p293, %s23, 1
      %p295 = scmp.lt.s32.totalorder %s24, 0
      %s296 = scalar_select %p295, %s24, 0
      %s297 = sadd.s32 %s296, %s294
      %s298 = smul.addr %s297, 8
      %s299 = scalar_lea.vmem %s5, %s298
      %v300 = vld [vmem:[%s0] sm:$0xff]
      %v301 = vld [vmem:[%s292] sm:$0xff]
      %vm302 = vcmask 64512
      %v304 = vsel %vm302, %v300, 0
      %306 = vmatpush.msra.mxu0 0.0
      %307 = vmatpush.msra.mxu0 0.0
      %308 = vmatpush.msra.mxu0 0.0
      %309 = vmatpush.msra.mxu0 0.0
      %310 = vmatpush.msra.mxu0 0.0
      %311 = vmatpush.msra.mxu0 0.0
      %312 = vmatpush.msra.mxu0 0.0
      %313 = vmatpush.msra.mxu0 0.0
      %314 = vmatpush.msra.mxu0 0.0
      %315 = vmatpush.msra.mxu0 0.0
      %316 = vmatpush.msra.mxu0 0.0
      %317 = vmatpush.msra.mxu0 0.0
      %318 = vmatpush.msra.mxu0 0.0
      %319 = vmatpush.msra.mxu0 0.0
      %320 = vmatpush.msra.mxu0 0.0
      %321 = vmatpush.msra.mxu0 %v301
      %322 = vmatmul.f32.gmra.mxu0 %v304
      %v323 = vpop.f32.mrf.mxu0
      %v324 = vadd.f32 0.0, %v323
      %325 = vdwg.mxu0
      %v326 = vld [vmem:[%s1] sm:$0xff]
      %328 = vset.pattern.permute.xlu0 0
      %329 = vperm.xlu0 %328, %v326
      %v330 = vpop.permute.xlu0 %329
      %v332 = vmul.f32 %v324, %v330
      %v333 = vld [vmem:[%s2] sm:$0xff]
      %335 = vset.pattern.permute.xlu0 0
      %336 = vperm.xlu0 %335, %v333
      %v337 = vpop.permute.xlu0 %336
      %v339 = vadd.f32 %v332, %v337
      %v340 = vmax.f32 %v339, 0.0
      %341 = vst [vmem:[%s299] sm:$0xff] %v340
      %v342 = vld [vmem:[%s3] sm:$0xff]
      %v343 = vld [vmem:[%s3 + $0x8] sm:$0xff]
      %v345 = vsel %vm302, %v342, 0
      %v348 = vsel %vm302, %v343, 0
      %350 = vmatpush.msra.mxu0 0.0
      %351 = vmatpush.msra.mxu0 0.0
      %352 = vmatpush.msra.mxu0 0.0
      %353 = vmatpush.msra.mxu0 0.0
      %354 = vmatpush.msra.mxu0 0.0
      %355 = vmatpush.msra.mxu0 0.0
      %356 = vmatpush.msra.mxu0 0.0
      %357 = vmatpush.msra.mxu0 0.0
      %358 = vmatpush.msra.mxu0 0.0
      %359 = vmatpush.msra.mxu0 0.0
      %360 = vmatpush.msra.mxu0 0.0
      %361 = vmatpush.msra.mxu0 0.0
      %362 = vmatpush.msra.mxu0 0.0
      %363 = vmatpush.msra.mxu0 0.0
      %364 = vmatpush.msra.mxu0 0.0
      %365 = vmatpush.msra.mxu0 %v340
      %366 = vmatmul.f32.gmra.mxu0 %v345
      %v367 = vpop.f32.mrf.mxu0
      %v368 = vadd.f32 0.0, %v367
      %369 = vmatmul.f32.gmra.mxu0 %v348
      %v370 = vpop.f32.mrf.mxu0
      %v371 = vadd.f32 0.0, %v370
      %372 = vdwg.mxu0
      %v373 = vlaneseq
      %v374 = vand.u32 %v373, 127
      %s375 = smul.u32 %s24, 128
      %s376 = ssub.s32 128, %s375
      %p377 = scmp.lt.s32.totalorder %s376, 128
      %s378 = scalar_select %p377, %s376, 128
      %v379 = vstv %s378
      %vm380 = vcmp.lt.s32.totalorder %v374, %v379
      %p381 = scmp.eq.s32.totalorder %s23, 0
      %p382 = scmp.eq.s32.totalorder %s24, 0
      %p383 = pnand %p381, %p382
      %p384 = pneg %p383
      // Predicated region
      $region41: #{weightnet_forward.6} parent=39 // pred_check
        _
      $region42: #{weightnet_forward.6} parent=39 // pred_check_branch
        %386 = sbr.rel (%p383) target = $region44
      $region43: #{weightnet_forward.6} parent=39 // pred_region
        %vm387 = vcmask 7168
        %388 = vst.msk [vmem:[%s6] sm:$0xff] %vm387, 0.0
        %389 = vst.msk [vmem:[%s6 + $0x8] sm:$0xff] %vm387, 0.0
        %390 = vst.msk [vmem:[%s7] sm:$0xff] %vm387, 0.0
        %391 = vst.msk [vmem:[%s7 + $0x8] sm:$0xff] %vm387, 0.0
      $region44: #{weightnet_forward.6} parent=39 // pred_fallthru
        _
      %v392 = vsel %vm380, 1, 0
      %vm393 = vcmp.eq.s32.totalorder %v392, 1
      %v394 = vsel %vm393, %v368, 0.0
      %v395 = vsel %vm393, %v371, 0.0
      %v396 = vld [vmem:[%s6] sm:$0xff]
      %v397 = vld [vmem:[%s6 + $0x8] sm:$0xff]
      %398 = vadd.xlane.f32.xlu0 %v394
      %v399 = vpop.xlane.xlu0 %398
      %400 = vadd.xlane.f32.xlu0 %v395
      %v401 = vpop.xlane.xlu0 %400
      %v402 = vadd.f32 %v396, %v399
      %v403 = vadd.f32 %v397, %v401
      %vm404 = vcmask 7168
      %405 = vst.msk [vmem:[%s6] sm:$0xff] %vm404, %v402
      %406 = vst.msk [vmem:[%s6 + $0x8] sm:$0xff] %vm404, %v403
      %v407 = vld [vmem:[%s7] sm:$0xff]
      %v408 = vld [vmem:[%s7 + $0x8] sm:$0xff]
      %v409 = vmul.f32 %v394, %v394
      %v410 = vmul.f32 %v395, %v395
      %411 = vadd.xlane.f32.xlu0 %v409
      %v412 = vpop.xlane.xlu0 %411
      %413 = vadd.xlane.f32.xlu0 %v410
      %v414 = vpop.xlane.xlu0 %413
      %v415 = vadd.f32 %v407, %v412
      %v416 = vadd.f32 %v408, %v414
      %417 = vst.msk [vmem:[%s7] sm:$0xff] %vm404, %v415
      %418 = vst.msk [vmem:[%s7 + $0x8] sm:$0xff] %vm404, %v416
      %p419 = scmp.lt.s32.totalorder %s23, 1
      %s420 = scalar_select %p419, %s23, 1
      %p421 = scmp.lt.s32.totalorder %s24, 0
      %s422 = scalar_select %p421, %s24, 0
      %s423 = sadd.s32 %s422, %s420
      %s424 = smul.addr %s423, 8
      %s425 = scalar_lea.vmem %s5, %s424
      // Predicated region
      $region45: #{weightnet_forward.6} parent=39 // pred_check
        %p426 = pneg %p163
      $region46: #{weightnet_forward.6} parent=39 // pred_check_branch
        %428 = sbr.rel (%p426) target = $region48
      $region47: #{weightnet_forward.6} parent=39 // pred_region
        _
      $region48: #{weightnet_forward.6} parent=39 // pred_fallthru
        _
      // Predicated region
      $region49: #{weightnet_forward.6} parent=39 // pred_check
        %p429 = pneg %p184
      $region50: #{weightnet_forward.6} parent=39 // pred_check_branch
        %431 = sbr.rel (%p429) target = $region52
      $region51: #{weightnet_forward.6} parent=39 // pred_region
        _
      $region52: #{weightnet_forward.6} parent=39 // pred_fallthru
        _
      // Predicated region
      $region53: #{weightnet_forward.6} parent=39 // pred_check
        %p432 = pneg %p205
      $region54: #{weightnet_forward.6} parent=39 // pred_check_branch
        %434 = sbr.rel (%p432) target = $region56
      $region55: #{weightnet_forward.6} parent=39 // pred_region
        _
      $region56: #{weightnet_forward.6} parent=39 // pred_fallthru
        _
      // Predicated region
      $region57: #{weightnet_forward.6} parent=39 // pred_check
        %p435 = pneg %p184
      $region58: #{weightnet_forward.6} parent=39 // pred_check_branch
        %437 = sbr.rel (%p435) target = $region60
      $region59: #{weightnet_forward.6} parent=39 // pred_region
        _
      $region60: #{weightnet_forward.6} parent=39 // pred_fallthru
        _
      // Predicated region
      $region61: #{weightnet_forward.6} parent=39 // pred_check
        %p438 = pneg %p205
      $region62: #{weightnet_forward.6} parent=39 // pred_check_branch
        %440 = sbr.rel (%p438) target = $region64
      $region63: #{weightnet_forward.6} parent=39 // pred_region
        _
      $region64: #{weightnet_forward.6} parent=39 // pred_fallthru
        _
    $region40: #{weightnet_forward.6} parent=5 // pred_fallthru
      _
    %p441 = scmp.le.s32.totalorder 2, %s14
    // Predicated region
    $region65: #{weightnet_forward.6} parent=5 // pred_check
      %p442 = pneg %p441
    $region66: #{weightnet_forward.6} parent=5 // pred_check_branch
      %444 = sbr.rel (%p442) target = $region68
    $region67: #{weightnet_forward.6} parent=5 // pred_region
      %s445 = ssub.s32 %s14, 2
      // Predicated region
      $region69: #{weightnet_forward.6} parent=67 // pred_check
        %p446 = pneg %p169
      $region70: #{weightnet_forward.6} parent=67 // pred_check_branch
        %448 = sbr.rel (%p446) target = $region72
      $region71: #{weightnet_forward.6} parent=67 // pred_region
        %p449 = scmp.lt.s32.totalorder %s25, 1
        %s450 = scalar_select %p449, %s25, 1
        %p451 = scmp.lt.s32.totalorder %s26, 0
        %s452 = scalar_select %p451, %s26, 0
        %s453 = sadd.s32 %s452, %s450
        %s454 = smul.addr %s453, 8
        %s455 = scalar_lea.vmem %s5, %s454
      $region72: #{weightnet_forward.6} parent=67 // pred_fallthru
        _
    $region68: #{weightnet_forward.6} parent=5 // pred_fallthru
      _
  $region6: #{weightnet_forward.6} parent=0 // loop_footer
    %s18 = sadd.s32 1, %s14
  $region7: #{weightnet_forward.6} parent=0 // loop_footer_branch
    %13 = sbr.rel target = $region3
  $region8: #{weightnet_forward.6} parent=0 // loop_exit
    _

// kernel: weightnet_forward.7
$region0: #{weightnet_forward.7}
  #allocation0 [shape = 'u32[]', space=smem, size = 0x4, offset = 0x4, fixed_abs, tag = 'smem constant byte address 0x4 - core index']
  #allocation1 [shape = 'u32[72,128]{1,0:T(1,128)}', space=vmem, size = 0x9000, scoped, tag = 'internal scratch']
  %s0 = inlined_call_operand.vmem [shape: f32[16,8], index: 0, kind: input, shape index: {}]
  %s1 = inlined_call_operand.vmem [shape: f32[16,1], index: 1, kind: input, shape index: {}]
  %s2 = inlined_call_operand.vmem [shape: f32[16,1], index: 2, kind: input, shape index: {}]
  %s3 = inlined_call_operand.vmem [shape: f32[2,8,128], index: 3, kind: input, shape index: {}]
  %s4 = inlined_call_operand.vmem [shape: f32[2,16,128], index: 4, kind: output, shape index: {}]
  %s5 = sld [smem:[#allocation0]]
  $region49: #{weightnet_forward.7} parent=0
    _
  %s7 = ssub.s32 1, %s5
  %s8 = scalar_select 0, %s7, %s5
  loop: start=0, step=1, limit=4
  $region2: #{weightnet_forward.7} parent=0 // loop_pre_header
    _
  $region3: #{weightnet_forward.7} parent=0 // loop_header
    %s10 = sphi 0, %s14
    %p11 = scmp.ge.s32.totalorder %s10, 4
    %s17 = sphi 0, %s29
    %s18 = sphi 0, %s25
    %s19 = sphi 0, %s17
    %s20 = sphi 0, %s18
    %s21 = sphi 0, %s19
    %s22 = sphi 0, %s20
    %s30 = sphi 0, %s30
    %s32 = sphi 0, %s30
    %s33 = sphi 0, %s32
    %s47 = sphi 0, %s33
    %s51 = sphi 0, %s51
    %s53 = sphi 0, %s51
    %s54 = sphi 0, %s53
    %s68 = sphi 0, %s54
    %s72 = sphi 0, %s72
    %s74 = sphi 0, %s72
    %s75 = sphi 0, %s74
    %s89 = sphi 0, %s75
    %s97 = sphi 0, %s99
    %s100 = sphi 0, %s97
    %s101 = sphi 0, %s100
    %s117 = sphi 0, %s101
    %s125 = sphi 0, %s127
    %s128 = sphi 0, %s125
    %s129 = sphi 0, %s128
    %s145 = sphi 0, %s129
  $region4: #{weightnet_forward.7} parent=0 // loop_header_branch
    %13 = sbr.rel (%p11) target = $region8
  $region5: #{weightnet_forward.7} parent=0 // loop_body
    %s15 = ssub.s32 %s10, 1
    %s16 = ssub.s32 %s10, 2
    %s23 = sadd.s32 1, %s18
    %p24 = scmp.ge.s32.totalorder %s23, 1
    %s25 = scalar_select %p24, 0, %s23
    %s26 = sadd.s32 1, %s17
    %s27 = scalar_select %p24, %s26, %s17
    %p28 = scmp.ge.s32.totalorder %s27, 2
    %s29 = scalar_select %p28, 0, %s27
    %s31 = sadd.s32 %s30, 1
    %p34 = scmp.eq.s32.totalorder %s10, 1
    %p35 = scmp.ne.s32.totalorder %s30, %s32
    %p36 = scmp.eq.s32.totalorder %s10, 0
    %p37 = por %p35, %p36
    %p38 = scmp.ne.s32.totalorder %s30, %s32
    %p39 = scmp.eq.s32.totalorder %s15, 1
    %p40 = por %p38, %p39
    %p41 = scmp.ne.s32.totalorder %s32, %s33
    %p42 = scmp.eq.s32.totalorder %s15, 0
    %p43 = por %p41, %p42
    %p44 = scmp.ne.s32.totalorder %s32, %s33
    %p45 = scmp.eq.s32.totalorder %s16, 1
    %p46 = por %p44, %p45
    %p48 = scmp.ne.s32.totalorder %s33, %s47
    %p49 = scmp.eq.s32.totalorder %s16, 0
    %p50 = por %p48, %p49
    %s52 = sadd.s32 %s51, 1
    %p55 = scmp.eq.s32.totalorder %s10, 1
    %p56 = scmp.ne.s32.totalorder %s51, %s53
    %p57 = scmp.eq.s32.totalorder %s10, 0
    %p58 = por %p56, %p57
    %p59 = scmp.ne.s32.totalorder %s51, %s53
    %p60 = scmp.eq.s32.totalorder %s15, 1
    %p61 = por %p59, %p60
    %p62 = scmp.ne.s32.totalorder %s53, %s54
    %p63 = scmp.eq.s32.totalorder %s15, 0
    %p64 = por %p62, %p63
    %p65 = scmp.ne.s32.totalorder %s53, %s54
    %p66 = scmp.eq.s32.totalorder %s16, 1
    %p67 = por %p65, %p66
    %p69 = scmp.ne.s32.totalorder %s54, %s68
    %p70 = scmp.eq.s32.totalorder %s16, 0
    %p71 = por %p69, %p70
    %s73 = sadd.s32 %s72, 1
    %p76 = scmp.eq.s32.totalorder %s10, 1
    %p77 = scmp.ne.s32.totalorder %s72, %s74
    %p78 = scmp.eq.s32.totalorder %s10, 0
    %p79 = por %p77, %p78
    %p80 = scmp.ne.s32.totalorder %s72, %s74
    %p81 = scmp.eq.s32.totalorder %s15, 1
    %p82 = por %p80, %p81
    %p83 = scmp.ne.s32.totalorder %s74, %s75
    %p84 = scmp.eq.s32.totalorder %s15, 0
    %p85 = por %p83, %p84
    %p86 = scmp.ne.s32.totalorder %s74, %s75
    %p87 = scmp.eq.s32.totalorder %s16, 1
    %p88 = por %p86, %p87
    %p90 = scmp.ne.s32.totalorder %s75, %s89
    %p91 = scmp.eq.s32.totalorder %s16, 0
    %p92 = por %p90, %p91
    %s93 = ssub.s32 %s17, %s29
    %s94 = ssub.s32 %s18, %s25
    %s95 = sor.u32 %s93, %s94
    %p96 = scmp.eq.s32.totalorder %s95, 0
    %s98 = sadd.s32 %s97, 1
    %s99 = scalar_select %p96, %s97, %s98
    %p102 = pneg %p96
    %p103 = scmp.eq.s32.totalorder %s10, 1
    %p104 = por %p102, %p103
    %p105 = scmp.ne.s32.totalorder %s97, %s100
    %p106 = scmp.eq.s32.totalorder %s10, 0
    %p107 = por %p105, %p106
    %p108 = scmp.ne.s32.totalorder %s97, %s100
    %p109 = scmp.eq.s32.totalorder %s15, 1
    %p110 = por %p108, %p109
    %p111 = scmp.ne.s32.totalorder %s100, %s101
    %p112 = scmp.eq.s32.totalorder %s15, 0
    %p113 = por %p111, %p112
    %p114 = scmp.ne.s32.totalorder %s100, %s101
    %p115 = scmp.eq.s32.totalorder %s16, 1
    %p116 = por %p114, %p115
    %p118 = scmp.ne.s32.totalorder %s101, %s117
    %p119 = scmp.eq.s32.totalorder %s16, 0
    %p120 = por %p118, %p119
    %s121 = ssub.s32 %s17, %s29
    %s122 = ssub.s32 %s18, %s25
    %s123 = sor.u32 %s121, %s122
    %p124 = scmp.eq.s32.totalorder %s123, 0
    %s126 = sadd.s32 %s125, 1
    %s127 = scalar_select %p124, %s125, %s126
    %p130 = pneg %p124
    %p131 = scmp.eq.s32.totalorder %s10, 1
    %p132 = por %p130, %p131
    %p133 = scmp.ne.s32.totalorder %s125, %s128
    %p134 = scmp.eq.s32.totalorder %s10, 0
    %p135 = por %p133, %p134
    %p136 = scmp.ne.s32.totalorder %s125, %s128
    %p137 = scmp.eq.s32.totalorder %s15, 1
    %p138 = por %p136, %p137
    %p139 = scmp.ne.s32.totalorder %s128, %s129
    %p140 = scmp.eq.s32.totalorder %s15, 0
    %p141 = por %p139, %p140
    %p142 = scmp.ne.s32.totalorder %s128, %s129
    %p143 = scmp.eq.s32.totalorder %s16, 1
    %p144 = por %p142, %p143
    %p146 = scmp.ne.s32.totalorder %s129, %s145
    %p147 = scmp.eq.s32.totalorder %s16, 0
    %p148 = por %p146, %p147
    %p149 = scmp.le.s32.totalorder 1, %s10
    %p150 = scmp.lt.s32.totalorder %s10, 3
    %p151 = pnand %p149, %p150
    %p152 = pneg %p151
    // Predicated region
    $region9: #{weightnet_forward.7} parent=5 // pred_check
      _
    $region10: #{weightnet_forward.7} parent=5 // pred_check_branch
      %154 = sbr.rel (%p151) target = $region12
    $region11: #{weightnet_forward.7} parent=5 // pred_region
      %s155 = ssub.s32 %s10, 1
      // Predicated region
      $region13: #{weightnet_forward.7} parent=11 // pred_check
        %p156 = pneg %p43
      $region14: #{weightnet_forward.7} parent=11 // pred_check_branch
        %158 = sbr.rel (%p156) target = $region16
      $region15: #{weightnet_forward.7} parent=11 // pred_region
        _
      $region16: #{weightnet_forward.7} parent=11 // pred_fallthru
        _
      // Predicated region
      $region17: #{weightnet_forward.7} parent=11 // pred_check
        %p159 = pneg %p64
      $region18: #{weightnet_forward.7} parent=11 // pred_check_branch
        %161 = sbr.rel (%p159) target = $region20
      $region19: #{weightnet_forward.7} parent=11 // pred_region
        _
      $region20: #{weightnet_forward.7} parent=11 // pred_fallthru
        _
      // Predicated region
      $region21: #{weightnet_forward.7} parent=11 // pred_check
        %p162 = pneg %p85
      $region22: #{weightnet_forward.7} parent=11 // pred_check_branch
        %164 = sbr.rel (%p162) target = $region24
      $region23: #{weightnet_forward.7} parent=11 // pred_region
        _
      $region24: #{weightnet_forward.7} parent=11 // pred_fallthru
        _
    $region12: #{weightnet_forward.7} parent=5 // pred_fallthru
      _
    %p165 = scmp.lt.s32.totalorder %s10, 2
    // Predicated region
    $region25: #{weightnet_forward.7} parent=5 // pred_check
      %p166 = pneg %p165
    $region26: #{weightnet_forward.7} parent=5 // pred_check_branch
      %168 = sbr.rel (%p166) target = $region28
    $region27: #{weightnet_forward.7} parent=5 // pred_region
      // Predicated region
      $region29: #{weightnet_forward.7} parent=27 // pred_check
        %p169 = pneg %p107
      $region30: #{weightnet_forward.7} parent=27 // pred_check_branch
        %171 = sbr.rel (%p169) target = $region32
      $region31: #{weightnet_forward.7} parent=27 // pred_region
        %p172 = scmp.lt.s32.totalorder %s17, 1
        %s173 = scalar_select %p172, %s17, 1
        %p174 = scmp.lt.s32.totalorder %s18, 0
        %s175 = scalar_select %p174, %s18, 0
        %s176 = sadd.s32 %s175, %s173
        %s177 = smul.addr %s176, 8
        %s178 = scalar_lea.vmem %s3, %s177
      $region32: #{weightnet_forward.7} parent=27 // pred_fallthru
        _
    $region28: #{weightnet_forward.7} parent=5 // pred_fallthru
      _
    %p179 = scmp.le.s32.totalorder 1, %s10
    %p180 = scmp.lt.s32.totalorder %s10, 3
    %p181 = pnand %p179, %p180
    %p182 = pneg %p181
    // Predicated region
    $region33: #{weightnet_forward.7} parent=5 // pred_check
      _
    $region34: #{weightnet_forward.7} parent=5 // pred_check_branch
      %184 = sbr.rel (%p181) target = $region36
    $region35: #{weightnet_forward.7} parent=5 // pred_region
      %s185 = ssub.s32 %s10, 1
      %p186 = pneg %p43
      %p187 = pneg %p40
      %p188 = pneg %p64
      %p189 = pneg %p61
      %p190 = pneg %p85
      %p191 = pneg %p82
      %p192 = scmp.lt.s32.totalorder %s19, 1
      %s193 = scalar_select %p192, %s19, 1
      %p194 = scmp.lt.s32.totalorder %s20, 0
      %s195 = scalar_select %p194, %s20, 0
      %s196 = sadd.s32 %s195, %s193
      %s197 = smul.addr %s196, 8
      %s198 = scalar_lea.vmem %s3, %s197
      %p199 = pneg %p113
      %p200 = pneg %p110
      %p201 = pneg %p141
      %p202 = pneg %p138
      %p203 = scmp.lt.s32.totalorder %s19, 1
      %s204 = scalar_select %p203, %s19, 1
      %p205 = scmp.lt.s32.totalorder %s20, 0
      %s206 = scalar_select %p205, %s20, 0
      %s207 = smul.addr %s204, 2
      %s208 = sadd.s32 %s206, %s207
      %s209 = smul.addr %s208, 8
      %s210 = scalar_lea.vmem %s4, %s209
      %p211 = scmp.lt.s32.totalorder %s19, 1
      %s212 = scalar_select %p211, %s19, 1
      %p213 = scmp.lt.s32.totalorder %s20, 0
      %s214 = scalar_select %p213, %s20, 0
      %s215 = sadd.s32 %s214, %s212
      %s216 = smul.addr %s215, 8
      %s217 = scalar_lea.vmem %s3, %s216
      %p218 = scmp.lt.s32.totalorder %s19, 1
      %s219 = scalar_select %p218, %s19, 1
      %p220 = scmp.lt.s32.totalorder %s20, 0
      %s221 = scalar_select %p220, %s20, 0
      %s222 = smul.addr %s219, 2
      %s223 = sadd.s32 %s221, %s222
      %s224 = smul.addr %s223, 8
      %s225 = scalar_lea.vmem %s4, %s224
      %v226 = vld [vmem:[%s0] sm:$0xff]
      %v227 = vld [vmem:[%s0 + $0x8] sm:$0xff]
      %v228 = vld [vmem:[%s217] sm:$0xff]
      %vm229 = vcmask 64512
      %v231 = vsel %vm229, %v226, 0
      %v234 = vsel %vm229, %v227, 0
      %236 = vmatpush.msra.mxu0 0.0
      %237 = vmatpush.msra.mxu0 0.0
      %238 = vmatpush.msra.mxu0 0.0
      %239 = vmatpush.msra.mxu0 0.0
      %240 = vmatpush.msra.mxu0 0.0
      %241 = vmatpush.msra.mxu0 0.0
      %242 = vmatpush.msra.mxu0 0.0
      %243 = vmatpush.msra.mxu0 0.0
      %244 = vmatpush.msra.mxu0 0.0
      %245 = vmatpush.msra.mxu0 0.0
      %246 = vmatpush.msra.mxu0 0.0
      %247 = vmatpush.msra.mxu0 0.0
      %248 = vmatpush.msra.mxu0 0.0
      %249 = vmatpush.msra.mxu0 0.0
      %250 = vmatpush.msra.mxu0 0.0
      %251 = vmatpush.msra.mxu0 %v228
      %252 = vmatmul.f32.gmra.mxu0 %v231
      %v253 = vpop.f32.mrf.mxu0
      %v254 = vadd.f32 0.0, %v253
      %255 = vmatmul.f32.gmra.mxu0 %v234
      %v256 = vpop.f32.mrf.mxu0
      %v257 = vadd.f32 0.0, %v256
      %258 = vdwg.mxu0
      %v259 = vld [vmem:[%s1] sm:$0xff]
      %v260 = vld [vmem:[%s1 + $0x8] sm:$0xff]
      %262 = vset.pattern.permute.xlu0 0
      %263 = vperm.xlu0 %262, %v259
      %v264 = vpop.permute.xlu0 %263
      %267 = vset.pattern.permute.xlu0 0
      %268 = vperm.xlu0 %267, %v260
      %v269 = vpop.permute.xlu0 %268
      %v271 = vmul.f32 %v254, %v264
      %v272 = vmul.f32 %v257, %v269
      %v273 = vld [vmem:[%s2] sm:$0xff]
      %v274 = vld [vmem:[%s2 + $0x8] sm:$0xff]
      %276 = vset.pattern.permute.xlu0 0
      %277 = vperm.xlu0 %276, %v273
      %v278 = vpop.permute.xlu0 %277
      %281 = vset.pattern.permute.xlu0 0
      %282 = vperm.xlu0 %281, %v274
      %v283 = vpop.permute.xlu0 %282
      %v285 = vadd.f32 %v271, %v278
      %v286 = vadd.f32 %v272, %v283
      %v287 = vmax.f32 %v285, 0.0
      %v288 = vmax.f32 %v286, 0.0
      %289 = vst [vmem:[%s225] sm:$0xff] %v287
      %290 = vst [vmem:[%s225 + $0x8] sm:$0xff] %v288
      %p291 = scmp.lt.s32.totalorder %s19, 1
      %s292 = scalar_select %p291, %s19, 1
      %p293 = scmp.lt.s32.totalorder %s20, 0
      %s294 = scalar_select %p293, %s20, 0
      %s295 = smul.addr %s292, 2
      %s296 = sadd.s32 %s294, %s295
      %s297 = smul.addr %s296, 8
      %s298 = scalar_lea.vmem %s4, %s297
      // Predicated region
      $region37: #{weightnet_forward.7} parent=35 // pred_check
        %p299 = pneg %p138
      $region38: #{weightnet_forward.7} parent=35 // pred_check_branch
        %301 = sbr.rel (%p299) target = $region40
      $region39: #{weightnet_forward.7} parent=35 // pred_region
        _
      $region40: #{weightnet_forward.7} parent=35 // pred_fallthru
        _
    $region36: #{weightnet_forward.7} parent=5 // pred_fallthru
      _
    %p302 = scmp.le.s32.totalorder 2, %s10
    // Predicated region
    $region41: #{weightnet_forward.7} parent=5 // pred_check
      %p303 = pneg %p302
    $region42: #{weightnet_forward.7} parent=5 // pred_check_branch
      %305 = sbr.rel (%p303) target = $region44
    $region43: #{weightnet_forward.7} parent=5 // pred_region
      %s306 = ssub.s32 %s10, 2
      // Predicated region
      $region45: #{weightnet_forward.7} parent=43 // pred_check
        %p307 = pneg %p144
      $region46: #{weightnet_forward.7} parent=43 // pred_check_branch
        %309 = sbr.rel (%p307) target = $region48
      $region47: #{weightnet_forward.7} parent=43 // pred_region
        %p310 = scmp.lt.s32.totalorder %s21, 1
        %s311 = scalar_select %p310, %s21, 1
        %p312 = scmp.lt.s32.totalorder %s22, 0
        %s313 = scalar_select %p312, %s22, 0
        %s314 = smul.addr %s311, 2
        %s315 = sadd.s32 %s313, %s314
        %s316 = smul.addr %s315, 8
        %s317 = scalar_lea.vmem %s4, %s316
      $region48: #{weightnet_forward.7} parent=43 // pred_fallthru
        _
    $region44: #{weightnet_forward.7} parent=5 // pred_fallthru
      _
  $region6: #{weightnet_forward.7} parent=0 // loop_footer
    %s14 = sadd.s32 1, %s10
  $region7: #{weightnet_forward.7} parent=0 // loop_footer_branch
    %9 = sbr.rel target = $region3
  $region8: #{weightnet_forward.7} parent=0 // loop_exit
    _

</llo_original>
